<compile_context>
chip_gen: v7x
topology: tpu7x:2x2x1
jax: 0.10.0
libtpu: 0.0.40
codegen_flags: <defaults>
</compile_context>

<pallas_src>
import jax
import jax.numpy as jnp
from jax.experimental import pallas as pl
from jax.experimental.pallas import tpu as pltpu

LANE = 128  # padded width of every fused sub-output segment


def _round_up(n, m):
    return ((n + m - 1) // m) * m


def _pad_to(a, rows, cols):
    r, c = a.shape
    return jnp.pad(a, ((0, rows - r), (0, cols - c)))


# ---------------------------------------------------------------------------
# Kernel
# ---------------------------------------------------------------------------
def gated_memory_kernel(
    x_ref,                       # (TB, input_size)
    wx_ref, bx_ref,              # fused x-LHS: [write|read|g1_main_x|g1_gate1_x]  (in, 512), (1, 512)
    w1m_ref,                     # GatedLinear1 mem-side [main | gate1]            (128, 256)
    w1g2_ref, b1g2_ref,          # GatedLinear1 gate_net layer 2                   (128, 128), (1, 128)
    w2_ref, b2_ref,              # GatedLinear2 fused [main | gate1]               (128, 256), (1, 256)
    w2g2_ref, b2g2_ref,          # GatedLinear2 gate_net layer 2                   (128, 128), (1, 128)
    out_ref,                     # (TB, 128) lane-dense padded output
):
    f32 = jnp.float32
    M = LANE
    mm_dt = wx_ref.dtype         # matmul operand dtype (bf16 default, f32 for strict check)
    x = x_ref[...]

    # ---- single fused matmul for write_net + read_gate + g1 main/gate1 (x-side) ----
    r = jnp.dot(x, wx_ref[...], preferred_element_type=f32) + bx_ref[...]      # (TB, 512)
    # MemoryModule: padded lanes -> tanh(0) * sigmoid(0) = 0
    mem = jnp.tanh(r[:, :M]) * jax.nn.sigmoid(r[:, M:2 * M])                   # (TB, 128)

    # ---- GatedLinear1 on concat([x, mem]) via split weights, main+gate1 fused ----
    f1 = r[:, 2 * M:] + jnp.dot(mem.astype(mm_dt), w1m_ref[...],
                                preferred_element_type=f32)                    # (TB, 256)
    lin1 = f1[:, :M]                                                           # padded lanes = 0
    g_h1 = jax.nn.relu(f1[:, M:])                                              # padded lanes = 0
    gates1 = jax.nn.sigmoid(
        jnp.dot(g_h1.astype(mm_dt), w1g2_ref[...], preferred_element_type=f32)
        + b1g2_ref[...]
    )
    h = jax.nn.relu(gates1 * lin1)                                             # (TB, 128), padded = 0

    # ---- GatedLinear2, main + gate1 fused ----
    f2 = jnp.dot(h.astype(mm_dt), w2_ref[...], preferred_element_type=f32) + b2_ref[...]
    lin2 = f2[:, :M]
    g_h2 = jax.nn.relu(f2[:, M:])
    gates2 = jax.nn.sigmoid(
        jnp.dot(g_h2.astype(mm_dt), w2g2_ref[...], preferred_element_type=f32)
        + b2g2_ref[...]
    )
    out_ref[...] = (gates2 * lin2).astype(out_ref.dtype)


# ---------------------------------------------------------------------------
# Parameter packing (done once, outside the kernel)
# ---------------------------------------------------------------------------
def pack_params(p, matmul_dtype=jnp.bfloat16):
    """Fuse same-LHS weights along the output axis; zero-pad every sub-output
    (and every contraction dim fed by a padded activation) to 128 lanes.
    Weights are cast to `matmul_dtype` here (once); biases stay f32 by design
    so they add directly to the f32 accumulators in the kernel."""
    M = LANE
    in_sz = p["ww"].shape[0]
    out_sz = p["g2_w"].shape[1]

    def cpad(a):  # pad columns to a full 128-lane tile
        return _pad_to(a, a.shape[0], M)

    g1_wx, g1_wm = p["g1_w"][:in_sz], p["g1_w"][in_sz:]
    g1_gw1x, g1_gw1m = p["g1_gw1"][:in_sz], p["g1_gw1"][in_sz:]

    packed = {}
    # Fused x-LHS weight [write | read | g1_main_x | g1_gate1_x]   (in, 512)
    packed["wx"] = jnp.concatenate(
        [cpad(p["ww"]), cpad(p["rw"]), cpad(g1_wx), cpad(g1_gw1x)], axis=1
    ).astype(matmul_dtype)
    packed["bx"] = jnp.concatenate(
        [cpad(p["wb"]), cpad(p["rb"]), cpad(p["g1_b"]), cpad(p["g1_gb1"])], axis=1)   # (1, 512) f32

    # GatedLinear1 mem-side [main | gate1]                          (128, 256)
    packed["w1m"] = _pad_to(
        jnp.concatenate([cpad(g1_wm), cpad(g1_gw1m)], axis=1), M, 2 * M
    ).astype(matmul_dtype)
    packed["w1g2"] = _pad_to(p["g1_gw2"], M, M).astype(matmul_dtype)                  # (128, 128)
    packed["b1g2"] = cpad(p["g1_gb2"])                                                # (1, 128) f32

    # GatedLinear2 [main | gate1]                                   (128, 256)
    packed["w2"] = _pad_to(
        jnp.concatenate([cpad(p["g2_w"]), cpad(p["g2_gw1"])], axis=1), M, 2 * M
    ).astype(matmul_dtype)
    packed["b2"] = jnp.concatenate([cpad(p["g2_b"]), cpad(p["g2_gb1"])], axis=1)      # (1, 256) f32
    packed["w2g2"] = _pad_to(p["g2_gw2"], M, M).astype(matmul_dtype)                  # (128, 128)
    packed["b2g2"] = cpad(p["g2_gb2"])                                                # (1, 128) f32

    packed["output_size"] = out_sz
    return packed


# ---------------------------------------------------------------------------
# Wrapper
# ---------------------------------------------------------------------------
def gated_memory_net(x, packed, *, block_b=256, min_grid_steps=1):
    """x: (B, input_size) f32 -> (B, output_size) f32.

    block_b: batch-tile target (256-512 on v6e/v7x; <=128-256 on v5e).
    min_grid_steps: set to 2 on v7x with large B so the parallel batch grid
    spans both TensorCores."""
    B, in_sz = x.shape
    M = LANE
    out_sz = packed["output_size"]
    mm_dt = packed["wx"].dtype

    # Batch tile: multiple of 16 (safe for f32 and bf16 sublane tiling),
    # collapses to a single step for small B.
    TB = max(16, min(_round_up(block_b, 16), _round_up(B, 16)))
    if min_grid_steps > 1:
        TB = max(16, min(TB, _round_up(pl.cdiv(B, min_grid_steps), 16)))
    Bp = _round_up(B, TB)

    xp = x.astype(mm_dt)
    if Bp != B:
        xp = jnp.pad(xp, ((0, Bp - B), (0, 0)))

    args = [
        xp,
        packed["wx"], packed["bx"],
        packed["w1m"],
        packed["w1g2"], packed["b1g2"],
        packed["w2"], packed["b2"],
        packed["w2g2"], packed["b2g2"],
    ]

    grid = (Bp // TB,)
    x_spec = pl.BlockSpec((TB, in_sz), lambda i: (i, 0))
    # Weights/biases: full-array blocks, constant index_map -> fetched once,
    # resident in VMEM across all grid steps.
    param_specs = [pl.BlockSpec(a.shape, lambda i: (0, 0)) for a in args[1:]]
    out_spec = pl.BlockSpec((TB, M), lambda i: (i, 0))

    # Advisory cost estimate (5 MXU matmuls after fusion) so XLA can overlap
    # this call with surrounding HLO.
    flops = 2 * Bp * (in_sz * 4 * M        # fused x-LHS matmul
                      + M * 2 * M          # mem-side of GatedLinear1
                      + M * M              # gate_net layer 2 (GL1)
                      + M * 2 * M          # GatedLinear2 main+gate1
                      + M * M)             # gate_net layer 2 (GL2)
    transcendentals = Bp * 4 * M           # tanh + 3x sigmoid
    bytes_accessed = int(sum(a.size * a.dtype.itemsize for a in args) + Bp * M * 4)

    out_padded = pl.pallas_call(
        gated_memory_kernel,
        out_shape=jax.ShapeDtypeStruct((Bp, M), jnp.float32),
        grid=grid,
        in_specs=[x_spec] + param_specs,
        out_specs=out_spec,
        compiler_params=pltpu.CompilerParams(
            dimension_semantics=("parallel",)),
        cost_estimate=pl.CostEstimate(
            flops=flops,
            transcendentals=transcendentals,
            bytes_accessed=bytes_accessed),
    )(*args)
    return out_padded[:B, :out_sz]


# ---------------------------------------------------------------------------
# Synthetic params + pure-JAX reference
# ---------------------------------------------------------------------------
def make_params(key, input_size, hidden_size, memory_size, output_size, gate_hidden=16):
    """Deterministic synthetic parameters; weights stored as (in, out)."""
    ks = iter(jax.random.split(key, 16))

    def w(shape, scale=0.1):
        return jax.random.normal(next(ks), shape, jnp.float32) * scale

    cat = input_size + memory_size
    p = {}
    # MemoryModule
    p["ww"] = w((input_size, memory_size))
    p["wb"] = w((1, memory_size))
    p["rw"] = w((input_size, memory_size))
    p["rb"] = w((1, memory_size))
    # GatedLinear 1 (in = cat, out = hidden)
    p["g1_w"] = w((cat, hidden_size))
    p["g1_b"] = jnp.zeros((1, hidden_size), jnp.float32)
    p["g1_gw1"] = w((cat, gate_hidden))
    p["g1_gb1"] = w((1, gate_hidden))
    p["g1_gw2"] = w((gate_hidden, hidden_size))
    p["g1_gb2"] = w((1, hidden_size))
    # GatedLinear 2 (in = hidden, out = output)
    p["g2_w"] = w((hidden_size, output_size))
    p["g2_b"] = jnp.zeros((1, output_size), jnp.float32)
    p["g2_gw1"] = w((hidden_size, gate_hidden))
    p["g2_gb1"] = w((1, gate_hidden))
    p["g2_gw2"] = w((gate_hidden, output_size))
    p["g2_gb2"] = w((1, output_size))
    return p


def reference_forward(x, p):
    """Pure-JAX reference mirroring the PyTorch module."""
    mem = jnp.tanh(x @ p["ww"] + p["wb"]) * jax.nn.sigmoid(x @ p["rw"] + p["rb"])
    x_cat = jnp.concatenate([x, mem], axis=-1)
    g_h1 = jax.nn.relu(x_cat @ p["g1_gw1"] + p["g1_gb1"])
    gates1 = jax.nn.sigmoid(g_h1 @ p["g1_gw2"] + p["g1_gb2"])
    h = jax.nn.relu(gates1 * (x_cat @ p["g1_w"] + p["g1_b"]))
    g_h2 = jax.nn.relu(h @ p["g2_gw1"] + p["g2_gb1"])
    gates2 = jax.nn.sigmoid(g_h2 @ p["g2_gw2"] + p["g2_gb2"])
    return gates2 * (h @ p["g2_w"] + p["g2_b"])


if __name__ == "__main__":
    # batch deliberately not a tile multiple: exercises padding + a 2-step grid.
    batch = 200
    input_size, hidden_size, memory_size, output_size = 16, 32, 16, 8

    key = jax.random.PRNGKey(0)
    k_x, k_p = jax.random.split(key)
    x = jax.random.normal(k_x, (batch, input_size), jnp.float32)
    params = make_params(k_p, input_size, hidden_size, memory_size, output_size)
    ref = jax.block_until_ready(reference_forward(x, params))

    # Strict f32-operand check against the reference.
    packed_f32 = pack_params(params, matmul_dtype=jnp.float32)
    out_f32 = jax.block_until_ready(gated_memory_net(x, packed_f32, block_b=128))
    assert out_f32.shape == (batch, output_size)
    assert jnp.allclose(out_f32, ref, atol=1e-5, rtol=1e-5), "f32 mismatch vs reference"

    # Default perf path: bf16 matmul operands (MXU bf16-native on v5e/v6e/v7x),
    # f32 accumulation / biases / elementwise.
    packed_bf16 = pack_params(params)  # matmul_dtype=bf16 default, cast once here
    out_bf16 = jax.block_until_ready(gated_memory_net(x, packed_bf16, block_b=128))
    assert out_bf16.shape == (batch, output_size)
    assert float(jnp.max(jnp.abs(out_bf16 - ref))) < 1e-1, "bf16 mismatch vs reference"

    print("KERNEL_OK")
</pallas_src>

<mosaic_0001>
module attributes {stable_mosaic.version = 11 : i64} {
  func.func @gated_memory_kernel(%arg0: i32, %arg1: memref<128x16xf32, #tpu.memory_space<vmem>>, %arg2: memref<16x512xf32, #tpu.memory_space<vmem>>, %arg3: memref<1x512xf32, #tpu.memory_space<vmem>>, %arg4: memref<128x256xf32, #tpu.memory_space<vmem>>, %arg5: memref<128x128xf32, #tpu.memory_space<vmem>>, %arg6: memref<1x128xf32, #tpu.memory_space<vmem>>, %arg7: memref<128x256xf32, #tpu.memory_space<vmem>>, %arg8: memref<1x256xf32, #tpu.memory_space<vmem>>, %arg9: memref<128x128xf32, #tpu.memory_space<vmem>>, %arg10: memref<1x128xf32, #tpu.memory_space<vmem>>, %arg11: memref<128x128xf32, #tpu.memory_space<vmem>>) attributes {dimension_semantics = [#tpu.dimension_semantics<parallel>], iteration_bounds = array<i64: 2>, scalar_prefetch = 0 : i64, scratch_operands = 0 : i64, tpu.core_type = #tpu.core_type<tc>, window_params = [{transform_indices = @transform_0, window_bounds = array<i64: 128, 16>}, {pipeline_mode = #tpu.pipeline_mode<synchronous>, transform_indices = @transform_1, window_bounds = array<i64: 16, 512>}, {pipeline_mode = #tpu.pipeline_mode<synchronous>, transform_indices = @transform_2, window_bounds = array<i64: 1, 512>}, {pipeline_mode = #tpu.pipeline_mode<synchronous>, transform_indices = @transform_3, window_bounds = array<i64: 128, 256>}, {pipeline_mode = #tpu.pipeline_mode<synchronous>, transform_indices = @transform_4, window_bounds = array<i64: 128, 128>}, {pipeline_mode = #tpu.pipeline_mode<synchronous>, transform_indices = @transform_5, window_bounds = array<i64: 1, 128>}, {pipeline_mode = #tpu.pipeline_mode<synchronous>, transform_indices = @transform_6, window_bounds = array<i64: 128, 256>}, {pipeline_mode = #tpu.pipeline_mode<synchronous>, transform_indices = @transform_7, window_bounds = array<i64: 1, 256>}, {pipeline_mode = #tpu.pipeline_mode<synchronous>, transform_indices = @transform_8, window_bounds = array<i64: 128, 128>}, {pipeline_mode = #tpu.pipeline_mode<synchronous>, transform_indices = @transform_9, window_bounds = array<i64: 1, 128>}, {transform_indices = @transform_10, window_bounds = array<i64: 128, 128>}]} {
    %c0 = arith.constant 0 : index
    %c0_0 = arith.constant 0 : index
    %0 = vector.load %arg1[%c0, %c0_0] : memref<128x16xf32, #tpu.memory_space<vmem>>, vector<128x16xf32>
    %c0_1 = arith.constant 0 : index
    %c0_2 = arith.constant 0 : index
    %1 = vector.load %arg2[%c0_1, %c0_2] : memref<16x512xf32, #tpu.memory_space<vmem>>, vector<16x512xf32>
    %cst = arith.constant dense<0.000000e+00> : vector<128x512xf32>
    %2 = tpu.matmul %0, %1, %cst {dimension_numbers = #tpu.dot_dimension_numbers<[1], [0], [0], [1], [0, 0, 1, 1], [], []>} : vector<128x16xf32>, vector<16x512xf32>, vector<128x512xf32> -> vector<128x512xf32>
    %c0_3 = arith.constant 0 : index
    %c0_4 = arith.constant 0 : index
    %3 = vector.load %arg3[%c0_3, %c0_4] : memref<1x512xf32, #tpu.memory_space<vmem>>, vector<1x512xf32>
    %4 = vector.broadcast %3 : vector<1x512xf32> to vector<128x512xf32>
    %5 = arith.addf %2, %4 : vector<128x512xf32>
    %6 = vector.extract_strided_slice %5 {offsets = [0, 0], sizes = [128, 128], strides = [1, 1]} : vector<128x512xf32> to vector<128x128xf32>
    %7 = math.tanh %6 : vector<128x128xf32>
    %8 = vector.extract_strided_slice %5 {offsets = [0, 128], sizes = [128, 128], strides = [1, 1]} : vector<128x512xf32> to vector<128x128xf32>
    %9 = arith.negf %8 : vector<128x128xf32>
    %10 = math.exp %9 : vector<128x128xf32>
    %cst_5 = arith.constant 1.000000e+00 : f32
    %11 = vector.broadcast %cst_5 : f32 to vector<128x128xf32>
    %12 = arith.addf %11, %10 : vector<128x128xf32>
    %13 = arith.divf %11, %12 : vector<128x128xf32>
    %14 = arith.mulf %7, %13 : vector<128x128xf32>
    %15 = vector.extract_strided_slice %5 {offsets = [0, 256], sizes = [128, 256], strides = [1, 1]} : vector<128x512xf32> to vector<128x256xf32>
    %c0_6 = arith.constant 0 : index
    %c0_7 = arith.constant 0 : index
    %16 = vector.load %arg4[%c0_6, %c0_7] : memref<128x256xf32, #tpu.memory_space<vmem>>, vector<128x256xf32>
    %cst_8 = arith.constant dense<0.000000e+00> : vector<128x256xf32>
    %17 = tpu.matmul %14, %16, %cst_8 {dimension_numbers = #tpu.dot_dimension_numbers<[1], [0], [0], [1], [0, 0, 1, 1], [], []>} : vector<128x128xf32>, vector<128x256xf32>, vector<128x256xf32> -> vector<128x256xf32>
    %18 = arith.addf %15, %17 : vector<128x256xf32>
    %19 = vector.extract_strided_slice %18 {offsets = [0, 0], sizes = [128, 128], strides = [1, 1]} : vector<128x256xf32> to vector<128x128xf32>
    %20 = vector.extract_strided_slice %18 {offsets = [0, 128], sizes = [128, 128], strides = [1, 1]} : vector<128x256xf32> to vector<128x128xf32>
    %cst_9 = arith.constant 0.000000e+00 : f32
    %21 = vector.broadcast %cst_9 : f32 to vector<128x128xf32>
    %22 = arith.maximumf %20, %21 : vector<128x128xf32>
    %c0_10 = arith.constant 0 : index
    %c0_11 = arith.constant 0 : index
    %23 = vector.load %arg5[%c0_10, %c0_11] : memref<128x128xf32, #tpu.memory_space<vmem>>, vector<128x128xf32>
    %cst_12 = arith.constant dense<0.000000e+00> : vector<128x128xf32>
    %24 = tpu.matmul %22, %23, %cst_12 {dimension_numbers = #tpu.dot_dimension_numbers<[1], [0], [0], [1], [0, 0, 1, 1], [], []>} : vector<128x128xf32>, vector<128x128xf32>, vector<128x128xf32> -> vector<128x128xf32>
    %c0_13 = arith.constant 0 : index
    %c0_14 = arith.constant 0 : index
    %25 = vector.load %arg6[%c0_13, %c0_14] : memref<1x128xf32, #tpu.memory_space<vmem>>, vector<1x128xf32>
    %26 = vector.broadcast %25 : vector<1x128xf32> to vector<128x128xf32>
    %27 = arith.addf %24, %26 : vector<128x128xf32>
    %28 = arith.negf %27 : vector<128x128xf32>
    %29 = math.exp %28 : vector<128x128xf32>
    %cst_15 = arith.constant 1.000000e+00 : f32
    %30 = vector.broadcast %cst_15 : f32 to vector<128x128xf32>
    %31 = arith.addf %30, %29 : vector<128x128xf32>
    %32 = arith.divf %30, %31 : vector<128x128xf32>
    %33 = arith.mulf %32, %19 : vector<128x128xf32>
    %cst_16 = arith.constant 0.000000e+00 : f32
    %34 = vector.broadcast %cst_16 : f32 to vector<128x128xf32>
    %35 = arith.maximumf %33, %34 : vector<128x128xf32>
    %c0_17 = arith.constant 0 : index
    %c0_18 = arith.constant 0 : index
    %36 = vector.load %arg7[%c0_17, %c0_18] : memref<128x256xf32, #tpu.memory_space<vmem>>, vector<128x256xf32>
    %cst_19 = arith.constant dense<0.000000e+00> : vector<128x256xf32>
    %37 = tpu.matmul %35, %36, %cst_19 {dimension_numbers = #tpu.dot_dimension_numbers<[1], [0], [0], [1], [0, 0, 1, 1], [], []>} : vector<128x128xf32>, vector<128x256xf32>, vector<128x256xf32> -> vector<128x256xf32>
    %c0_20 = arith.constant 0 : index
    %c0_21 = arith.constant 0 : index
    %38 = vector.load %arg8[%c0_20, %c0_21] : memref<1x256xf32, #tpu.memory_space<vmem>>, vector<1x256xf32>
    %39 = vector.broadcast %38 : vector<1x256xf32> to vector<128x256xf32>
    %40 = arith.addf %37, %39 : vector<128x256xf32>
    %41 = vector.extract_strided_slice %40 {offsets = [0, 0], sizes = [128, 128], strides = [1, 1]} : vector<128x256xf32> to vector<128x128xf32>
    %42 = vector.extract_strided_slice %40 {offsets = [0, 128], sizes = [128, 128], strides = [1, 1]} : vector<128x256xf32> to vector<128x128xf32>
    %cst_22 = arith.constant 0.000000e+00 : f32
    %43 = vector.broadcast %cst_22 : f32 to vector<128x128xf32>
    %44 = arith.maximumf %42, %43 : vector<128x128xf32>
    %c0_23 = arith.constant 0 : index
    %c0_24 = arith.constant 0 : index
    %45 = vector.load %arg9[%c0_23, %c0_24] : memref<128x128xf32, #tpu.memory_space<vmem>>, vector<128x128xf32>
    %cst_25 = arith.constant dense<0.000000e+00> : vector<128x128xf32>
    %46 = tpu.matmul %44, %45, %cst_25 {dimension_numbers = #tpu.dot_dimension_numbers<[1], [0], [0], [1], [0, 0, 1, 1], [], []>} : vector<128x128xf32>, vector<128x128xf32>, vector<128x128xf32> -> vector<128x128xf32>
    %c0_26 = arith.constant 0 : index
    %c0_27 = arith.constant 0 : index
    %47 = vector.load %arg10[%c0_26, %c0_27] : memref<1x128xf32, #tpu.memory_space<vmem>>, vector<1x128xf32>
    %48 = vector.broadcast %47 : vector<1x128xf32> to vector<128x128xf32>
    %49 = arith.addf %46, %48 : vector<128x128xf32>
    %50 = arith.negf %49 : vector<128x128xf32>
    %51 = math.exp %50 : vector<128x128xf32>
    %cst_28 = arith.constant 1.000000e+00 : f32
    %52 = vector.broadcast %cst_28 : f32 to vector<128x128xf32>
    %53 = arith.addf %52, %51 : vector<128x128xf32>
    %54 = arith.divf %52, %53 : vector<128x128xf32>
    %55 = arith.mulf %54, %41 : vector<128x128xf32>
    %c0_29 = arith.constant 0 : index
    %c0_30 = arith.constant 0 : index
    %56 = vector.load %arg11[%c0_29, %c0_30] : memref<128x128xf32, #tpu.memory_space<vmem>>, vector<128x128xf32>
    tpu.vector_store %arg11[%c0_29, %c0_30], %55 {strides = array<i32>} : memref<128x128xf32, #tpu.memory_space<vmem>>, vector<128x128xf32>,
    return
  }
  func.func @transform_0(%arg0: i32) -> (i32, i32) {
    %c0_i32 = arith.constant 0 : i32
    %c0_i32_0 = arith.constant 0 : i32
    return %arg0, %c0_i32 : i32, i32
  }
  func.func @transform_1(%arg0: i32) -> (i32, i32) {
    %c0_i32 = arith.constant 0 : i32
    %c0_i32_0 = arith.constant 0 : i32
    %c0_i32_1 = arith.constant 0 : i32
    return %c0_i32, %c0_i32_0 : i32, i32
  }
  func.func @transform_2(%arg0: i32) -> (i32, i32) {
    %c0_i32 = arith.constant 0 : i32
    %c0_i32_0 = arith.constant 0 : i32
    %c0_i32_1 = arith.constant 0 : i32
    return %c0_i32, %c0_i32_0 : i32, i32
  }
  func.func @transform_3(%arg0: i32) -> (i32, i32) {
    %c0_i32 = arith.constant 0 : i32
    %c0_i32_0 = arith.constant 0 : i32
    %c0_i32_1 = arith.constant 0 : i32
    return %c0_i32, %c0_i32_0 : i32, i32
  }
  func.func @transform_4(%arg0: i32) -> (i32, i32) {
    %c0_i32 = arith.constant 0 : i32
    %c0_i32_0 = arith.constant 0 : i32
    %c0_i32_1 = arith.constant 0 : i32
    return %c0_i32, %c0_i32_0 : i32, i32
  }
  func.func @transform_5(%arg0: i32) -> (i32, i32) {
    %c0_i32 = arith.constant 0 : i32
    %c0_i32_0 = arith.constant 0 : i32
    %c0_i32_1 = arith.constant 0 : i32
    return %c0_i32, %c0_i32_0 : i32, i32
  }
  func.func @transform_6(%arg0: i32) -> (i32, i32) {
    %c0_i32 = arith.constant 0 : i32
    %c0_i32_0 = arith.constant 0 : i32
    %c0_i32_1 = arith.constant 0 : i32
    return %c0_i32, %c0_i32_0 : i32, i32
  }
  func.func @transform_7(%arg0: i32) -> (i32, i32) {
    %c0_i32 = arith.constant 0 : i32
    %c0_i32_0 = arith.constant 0 : i32
    %c0_i32_1 = arith.constant 0 : i32
    return %c0_i32, %c0_i32_0 : i32, i32
  }
  func.func @transform_8(%arg0: i32) -> (i32, i32) {
    %c0_i32 = arith.constant 0 : i32
    %c0_i32_0 = arith.constant 0 : i32
    %c0_i32_1 = arith.constant 0 : i32
    return %c0_i32, %c0_i32_0 : i32, i32
  }
  func.func @transform_9(%arg0: i32) -> (i32, i32) {
    %c0_i32 = arith.constant 0 : i32
    %c0_i32_0 = arith.constant 0 : i32
    %c0_i32_1 = arith.constant 0 : i32
    return %c0_i32, %c0_i32_0 : i32, i32
  }
  func.func @transform_10(%arg0: i32) -> (i32, i32) {
    %c0_i32 = arith.constant 0 : i32
    %c0_i32_0 = arith.constant 0 : i32
    return %arg0, %c0_i32 : i32, i32
  }
}

</mosaic_0001>

<llo_original>
// kernel: tpu_custom_call.1
$region0: #{tpu_custom_call.1}
  #allocation0 [shape = 'u32[]', space=smem, size = 0x4, offset = 0x4, fixed_abs, tag = 'smem constant byte address 0x4 - core index']
  #allocation1 [shape = 'u32[144,128]{1,0:T(1,128)}', space=vmem, size = 0x12000, scoped, tag = 'internal scratch']
  %s0 = inlined_call_operand.vmem [shape: f32[256,16], index: 0, kind: input, shape index: {}]
  %s1 = inlined_call_operand.hbm [shape: f32[16,512], index: 1, kind: input, shape index: {}]
  %s2 = inlined_call_operand.vmem [shape: f32[1,512], index: 2, kind: input, shape index: {}]
  %s3 = inlined_call_operand.vmem [shape: f32[128,256], index: 3, kind: input, shape index: {}]
  %s4 = inlined_call_operand.hbm [shape: f32[128,128], index: 4, kind: input, shape index: {}]
  %s5 = inlined_call_operand.vmem [shape: f32[1,128], index: 5, kind: input, shape index: {}]
  %s6 = inlined_call_operand.hbm [shape: f32[128,256], index: 6, kind: input, shape index: {}]
  %s7 = inlined_call_operand.vmem [shape: f32[1,256], index: 7, kind: input, shape index: {}]
  %s8 = inlined_call_operand.hbm [shape: f32[128,128], index: 8, kind: input, shape index: {}]
  %s9 = inlined_call_operand.vmem [shape: f32[1,128], index: 9, kind: input, shape index: {}]
  %s10 = inlined_call_operand.hbm [shape: f32[256,128], index: 10, kind: output, shape index: {}]
  %s11 = sld [smem:[#allocation0]]
  $region89: #{tpu_custom_call.1} parent=0
    _
  %s13 = ssub.s32 1, %s11
  %s14 = scalar_select 0, %s13, %s11
  $region1: #{tpu_custom_call.1} parent=0
    #allocation2 [shape = 'u8[32768]{0}', space=vmem, size = 0x8000, scoped, tag = 'input window, operand 1, single buffered']
    #allocation3 [shape = 's32[2]{0}', space=sflag, size = 0x8, scoped, tag = 'scoped memory for tpu_custom_call.1']
    #allocation4 [shape = 's32[2]{0}', space=sflag, size = 0x8, scoped, tag = 'scoped memory for tpu_custom_call.1']
    #allocation5 [shape = 'u8[65536]{0}', space=vmem, size = 0x10000, scoped, tag = 'input window, operand 4, single buffered']
    #allocation6 [shape = 's32[1]{0}', space=sflag, size = 0x4, scoped, tag = 'scoped memory for tpu_custom_call.1']
    #allocation7 [shape = 'u8[131072]{0}', space=vmem, size = 0x20000, scoped, tag = 'input window, operand 6, single buffered']
    #allocation8 [shape = 'u8[65536]{0}', space=vmem, size = 0x10000, scoped, tag = 'input window, operand 8, single buffered']
    #allocation9 [shape = 's32[1]{0}', space=sflag, size = 0x4, scoped, tag = 'scoped memory for tpu_custom_call.1']
    #allocation10 [shape = 'u8[131072]{0}', space=vmem, size = 0x20000, scoped, tag = 'output window, operand 0']
    %15 = vsyncpa [#allocation3], 0
    %16 = vsyncpa [#allocation6], 0
    %17 = vsyncpa [#allocation9], 0
    %18 = vsyncpa [#allocation4], 0
    %s19 = scalar_lea.sflag [#allocation4], 1
    %20 = vsyncpa %s19, 0
    loop: start=0, step=1, limit=4
    $region2: #{tpu_custom_call.1} parent=1 // loop_pre_header
      _
    $region3: #{tpu_custom_call.1} parent=1 // loop_header
      %s22 = sphi 0, %s26
      %p23 = scmp.ge.s32.totalorder %s22, 4
      %s32 = sphi 0, %s34
      %s35 = sphi 0, %s32
      %s36 = sphi 0, %s35
      %s52 = sphi 0, %s36
      %s56 = sphi 0, %s56
      %s58 = sphi 0, %s56
      %s59 = sphi 0, %s58
      %s73 = sphi 0, %s59
      %s77 = sphi 0, %s77
      %s79 = sphi 0, %s77
      %s80 = sphi 0, %s79
      %s94 = sphi 0, %s80
      %s98 = sphi 0, %s98
      %s100 = sphi 0, %s98
      %s101 = sphi 0, %s100
      %s115 = sphi 0, %s101
      %s119 = sphi 0, %s119
      %s121 = sphi 0, %s119
      %s122 = sphi 0, %s121
      %s136 = sphi 0, %s122
      %s140 = sphi 0, %s140
      %s142 = sphi 0, %s140
      %s143 = sphi 0, %s142
      %s157 = sphi 0, %s143
      %s161 = sphi 0, %s161
      %s163 = sphi 0, %s161
      %s164 = sphi 0, %s163
      %s178 = sphi 0, %s164
      %s182 = sphi 0, %s182
      %s184 = sphi 0, %s182
      %s185 = sphi 0, %s184
      %s199 = sphi 0, %s185
      %s203 = sphi 0, %s203
      %s205 = sphi 0, %s203
      %s206 = sphi 0, %s205
      %s220 = sphi 0, %s206
      %s224 = sphi 0, %s224
      %s226 = sphi 0, %s224
      %s227 = sphi 0, %s226
      %s241 = sphi 0, %s227
      %s247 = sphi 0, %s249
      %s250 = sphi 0, %s247
      %s251 = sphi 0, %s250
      %s267 = sphi 0, %s251
    $region4: #{tpu_custom_call.1} parent=1 // loop_header_branch
      %25 = sbr.rel (%p23) target = $region8
    $region5: #{tpu_custom_call.1} parent=1 // loop_body
      %s27 = ssub.s32 %s22, 1
      %s28 = ssub.s32 %s22, 2
      %s29 = sadd.s32 %s22, 1
      %s30 = ssub.s32 %s22, %s29
      %p31 = scmp.eq.s32.totalorder %s30, 0
      %s33 = sadd.s32 %s32, 1
      %s34 = scalar_select %p31, %s32, %s33
      %p37 = pneg %p31
      %p38 = scmp.eq.s32.totalorder %s22, 1
      %p39 = por %p37, %p38
      %p40 = scmp.ne.s32.totalorder %s32, %s35
      %p41 = scmp.eq.s32.totalorder %s22, 0
      %p42 = por %p40, %p41
      %p43 = scmp.ne.s32.totalorder %s32, %s35
      %p44 = scmp.eq.s32.totalorder %s27, 1
      %p45 = por %p43, %p44
      %p46 = scmp.ne.s32.totalorder %s35, %s36
      %p47 = scmp.eq.s32.totalorder %s27, 0
      %p48 = por %p46, %p47
      %p49 = scmp.ne.s32.totalorder %s35, %s36
      %p50 = scmp.eq.s32.totalorder %s28, 1
      %p51 = por %p49, %p50
      %p53 = scmp.ne.s32.totalorder %s36, %s52
      %p54 = scmp.eq.s32.totalorder %s28, 0
      %p55 = por %p53, %p54
      %s57 = sadd.s32 %s56, 1
      %p60 = scmp.eq.s32.totalorder %s22, 1
      %p61 = scmp.ne.s32.totalorder %s56, %s58
      %p62 = scmp.eq.s32.totalorder %s22, 0
      %p63 = por %p61, %p62
      %p64 = scmp.ne.s32.totalorder %s56, %s58
      %p65 = scmp.eq.s32.totalorder %s27, 1
      %p66 = por %p64, %p65
      %p67 = scmp.ne.s32.totalorder %s58, %s59
      %p68 = scmp.eq.s32.totalorder %s27, 0
      %p69 = por %p67, %p68
      %p70 = scmp.ne.s32.totalorder %s58, %s59
      %p71 = scmp.eq.s32.totalorder %s28, 1
      %p72 = por %p70, %p71
      %p74 = scmp.ne.s32.totalorder %s59, %s73
      %p75 = scmp.eq.s32.totalorder %s28, 0
      %p76 = por %p74, %p75
      %s78 = sadd.s32 %s77, 1
      %p81 = scmp.eq.s32.totalorder %s22, 1
      %p82 = scmp.ne.s32.totalorder %s77, %s79
      %p83 = scmp.eq.s32.totalorder %s22, 0
      %p84 = por %p82, %p83
      %p85 = scmp.ne.s32.totalorder %s77, %s79
      %p86 = scmp.eq.s32.totalorder %s27, 1
      %p87 = por %p85, %p86
      %p88 = scmp.ne.s32.totalorder %s79, %s80
      %p89 = scmp.eq.s32.totalorder %s27, 0
      %p90 = por %p88, %p89
      %p91 = scmp.ne.s32.totalorder %s79, %s80
      %p92 = scmp.eq.s32.totalorder %s28, 1
      %p93 = por %p91, %p92
      %p95 = scmp.ne.s32.totalorder %s80, %s94
      %p96 = scmp.eq.s32.totalorder %s28, 0
      %p97 = por %p95, %p96
      %s99 = sadd.s32 %s98, 1
      %p102 = scmp.eq.s32.totalorder %s22, 1
      %p103 = scmp.ne.s32.totalorder %s98, %s100
      %p104 = scmp.eq.s32.totalorder %s22, 0
      %p105 = por %p103, %p104
      %p106 = scmp.ne.s32.totalorder %s98, %s100
      %p107 = scmp.eq.s32.totalorder %s27, 1
      %p108 = por %p106, %p107
      %p109 = scmp.ne.s32.totalorder %s100, %s101
      %p110 = scmp.eq.s32.totalorder %s27, 0
      %p111 = por %p109, %p110
      %p112 = scmp.ne.s32.totalorder %s100, %s101
      %p113 = scmp.eq.s32.totalorder %s28, 1
      %p114 = por %p112, %p113
      %p116 = scmp.ne.s32.totalorder %s101, %s115
      %p117 = scmp.eq.s32.totalorder %s28, 0
      %p118 = por %p116, %p117
      %s120 = sadd.s32 %s119, 1
      %p123 = scmp.eq.s32.totalorder %s22, 1
      %p124 = scmp.ne.s32.totalorder %s119, %s121
      %p125 = scmp.eq.s32.totalorder %s22, 0
      %p126 = por %p124, %p125
      %p127 = scmp.ne.s32.totalorder %s119, %s121
      %p128 = scmp.eq.s32.totalorder %s27, 1
      %p129 = por %p127, %p128
      %p130 = scmp.ne.s32.totalorder %s121, %s122
      %p131 = scmp.eq.s32.totalorder %s27, 0
      %p132 = por %p130, %p131
      %p133 = scmp.ne.s32.totalorder %s121, %s122
      %p134 = scmp.eq.s32.totalorder %s28, 1
      %p135 = por %p133, %p134
      %p137 = scmp.ne.s32.totalorder %s122, %s136
      %p138 = scmp.eq.s32.totalorder %s28, 0
      %p139 = por %p137, %p138
      %s141 = sadd.s32 %s140, 1
      %p144 = scmp.eq.s32.totalorder %s22, 1
      %p145 = scmp.ne.s32.totalorder %s140, %s142
      %p146 = scmp.eq.s32.totalorder %s22, 0
      %p147 = por %p145, %p146
      %p148 = scmp.ne.s32.totalorder %s140, %s142
      %p149 = scmp.eq.s32.totalorder %s27, 1
      %p150 = por %p148, %p149
      %p151 = scmp.ne.s32.totalorder %s142, %s143
      %p152 = scmp.eq.s32.totalorder %s27, 0
      %p153 = por %p151, %p152
      %p154 = scmp.ne.s32.totalorder %s142, %s143
      %p155 = scmp.eq.s32.totalorder %s28, 1
      %p156 = por %p154, %p155
      %p158 = scmp.ne.s32.totalorder %s143, %s157
      %p159 = scmp.eq.s32.totalorder %s28, 0
      %p160 = por %p158, %p159
      %s162 = sadd.s32 %s161, 1
      %p165 = scmp.eq.s32.totalorder %s22, 1
      %p166 = scmp.ne.s32.totalorder %s161, %s163
      %p167 = scmp.eq.s32.totalorder %s22, 0
      %p168 = por %p166, %p167
      %p169 = scmp.ne.s32.totalorder %s161, %s163
      %p170 = scmp.eq.s32.totalorder %s27, 1
      %p171 = por %p169, %p170
      %p172 = scmp.ne.s32.totalorder %s163, %s164
      %p173 = scmp.eq.s32.totalorder %s27, 0
      %p174 = por %p172, %p173
      %p175 = scmp.ne.s32.totalorder %s163, %s164
      %p176 = scmp.eq.s32.totalorder %s28, 1
      %p177 = por %p175, %p176
      %p179 = scmp.ne.s32.totalorder %s164, %s178
      %p180 = scmp.eq.s32.totalorder %s28, 0
      %p181 = por %p179, %p180
      %s183 = sadd.s32 %s182, 1
      %p186 = scmp.eq.s32.totalorder %s22, 1
      %p187 = scmp.ne.s32.totalorder %s182, %s184
      %p188 = scmp.eq.s32.totalorder %s22, 0
      %p189 = por %p187, %p188
      %p190 = scmp.ne.s32.totalorder %s182, %s184
      %p191 = scmp.eq.s32.totalorder %s27, 1
      %p192 = por %p190, %p191
      %p193 = scmp.ne.s32.totalorder %s184, %s185
      %p194 = scmp.eq.s32.totalorder %s27, 0
      %p195 = por %p193, %p194
      %p196 = scmp.ne.s32.totalorder %s184, %s185
      %p197 = scmp.eq.s32.totalorder %s28, 1
      %p198 = por %p196, %p197
      %p200 = scmp.ne.s32.totalorder %s185, %s199
      %p201 = scmp.eq.s32.totalorder %s28, 0
      %p202 = por %p200, %p201
      %s204 = sadd.s32 %s203, 1
      %p207 = scmp.eq.s32.totalorder %s22, 1
      %p208 = scmp.ne.s32.totalorder %s203, %s205
      %p209 = scmp.eq.s32.totalorder %s22, 0
      %p210 = por %p208, %p209
      %p211 = scmp.ne.s32.totalorder %s203, %s205
      %p212 = scmp.eq.s32.totalorder %s27, 1
      %p213 = por %p211, %p212
      %p214 = scmp.ne.s32.totalorder %s205, %s206
      %p215 = scmp.eq.s32.totalorder %s27, 0
      %p216 = por %p214, %p215
      %p217 = scmp.ne.s32.totalorder %s205, %s206
      %p218 = scmp.eq.s32.totalorder %s28, 1
      %p219 = por %p217, %p218
      %p221 = scmp.ne.s32.totalorder %s206, %s220
      %p222 = scmp.eq.s32.totalorder %s28, 0
      %p223 = por %p221, %p222
      %s225 = sadd.s32 %s224, 1
      %p228 = scmp.eq.s32.totalorder %s22, 1
      %p229 = scmp.ne.s32.totalorder %s224, %s226
      %p230 = scmp.eq.s32.totalorder %s22, 0
      %p231 = por %p229, %p230
      %p232 = scmp.ne.s32.totalorder %s224, %s226
      %p233 = scmp.eq.s32.totalorder %s27, 1
      %p234 = por %p232, %p233
      %p235 = scmp.ne.s32.totalorder %s226, %s227
      %p236 = scmp.eq.s32.totalorder %s27, 0
      %p237 = por %p235, %p236
      %p238 = scmp.ne.s32.totalorder %s226, %s227
      %p239 = scmp.eq.s32.totalorder %s28, 1
      %p240 = por %p238, %p239
      %p242 = scmp.ne.s32.totalorder %s227, %s241
      %p243 = scmp.eq.s32.totalorder %s28, 0
      %p244 = por %p242, %p243
      %s245 = ssub.s32 %s22, %s29
      %p246 = scmp.eq.s32.totalorder %s245, 0
      %s248 = sadd.s32 %s247, 1
      %s249 = scalar_select %p246, %s247, %s248
      %p252 = pneg %p246
      %p253 = scmp.eq.s32.totalorder %s22, 1
      %p254 = por %p252, %p253
      %p255 = scmp.ne.s32.totalorder %s247, %s250
      %p256 = scmp.eq.s32.totalorder %s22, 0
      %p257 = por %p255, %p256
      %p258 = scmp.ne.s32.totalorder %s247, %s250
      %p259 = scmp.eq.s32.totalorder %s27, 1
      %p260 = por %p258, %p259
      %p261 = scmp.ne.s32.totalorder %s250, %s251
      %p262 = scmp.eq.s32.totalorder %s27, 0
      %p263 = por %p261, %p262
      %p264 = scmp.ne.s32.totalorder %s250, %s251
      %p265 = scmp.eq.s32.totalorder %s28, 1
      %p266 = por %p264, %p265
      %p268 = scmp.ne.s32.totalorder %s251, %s267
      %p269 = scmp.eq.s32.totalorder %s28, 0
      %p270 = por %p268, %p269
      %p271 = scmp.le.s32.totalorder 1, %s22
      %p272 = scmp.lt.s32.totalorder %s22, 3
      %p273 = pnand %p271, %p272
      %p274 = pneg %p273
      // Predicated region
      $region9: #{tpu_custom_call.1} parent=5 // pred_check
        _
      $region10: #{tpu_custom_call.1} parent=5 // pred_check_branch
        %276 = sbr.rel (%p273) target = $region12
      $region11: #{tpu_custom_call.1} parent=5 // pred_region
        %s277 = ssub.s32 %s22, 1
        // Predicated region
        $region13: #{tpu_custom_call.1} parent=11 // pred_check
          %p278 = pneg %p69
        $region14: #{tpu_custom_call.1} parent=11 // pred_check_branch
          %280 = sbr.rel (%p278) target = $region16
        $region15: #{tpu_custom_call.1} parent=11 // pred_region
          %s282 = ssub.s32 1024, 1024
          %283 = vsyncadd [#allocation3], %s282
          %s284 = sshll.u32 [#allocation2], 4
          %s285 = int_to_ptr.vmem [resolvable:$true] %s284
          %290 = dma.hbm_to_vmem [thread:$0]  %s1, 1024, %s285, [#allocation3], 512, 512, 32
        $region16: #{tpu_custom_call.1} parent=11 // pred_fallthru
          _
        // Predicated region
        $region17: #{tpu_custom_call.1} parent=11 // pred_check
          %p291 = pneg %p90
        $region18: #{tpu_custom_call.1} parent=11 // pred_check_branch
          %293 = sbr.rel (%p291) target = $region20
        $region19: #{tpu_custom_call.1} parent=11 // pred_region
          _
        $region20: #{tpu_custom_call.1} parent=11 // pred_fallthru
          _
        // Predicated region
        $region21: #{tpu_custom_call.1} parent=11 // pred_check
          %p294 = pneg %p111
        $region22: #{tpu_custom_call.1} parent=11 // pred_check_branch
          %296 = sbr.rel (%p294) target = $region24
        $region23: #{tpu_custom_call.1} parent=11 // pred_region
          _
        $region24: #{tpu_custom_call.1} parent=11 // pred_fallthru
          _
        // Predicated region
        $region25: #{tpu_custom_call.1} parent=11 // pred_check
          %p297 = pneg %p132
        $region26: #{tpu_custom_call.1} parent=11 // pred_check_branch
          %299 = sbr.rel (%p297) target = $region28
        $region27: #{tpu_custom_call.1} parent=11 // pred_region
          %s301 = ssub.s32 2048, 2048
          %302 = vsyncadd [#allocation6], %s301
          %s303 = sshll.u32 [#allocation5], 4
          %s304 = int_to_ptr.vmem [resolvable:$true] %s303
          %309 = dma.hbm_to_vmem [thread:$0]  %s4, 2048, %s304, [#allocation6], 128, 128, 8
        $region28: #{tpu_custom_call.1} parent=11 // pred_fallthru
          _
        // Predicated region
        $region29: #{tpu_custom_call.1} parent=11 // pred_check
          %p310 = pneg %p153
        $region30: #{tpu_custom_call.1} parent=11 // pred_check_branch
          %312 = sbr.rel (%p310) target = $region32
        $region31: #{tpu_custom_call.1} parent=11 // pred_region
          _
        $region32: #{tpu_custom_call.1} parent=11 // pred_fallthru
          _
        // Predicated region
        $region33: #{tpu_custom_call.1} parent=11 // pred_check
          %p313 = pneg %p174
        $region34: #{tpu_custom_call.1} parent=11 // pred_check_branch
          %315 = sbr.rel (%p313) target = $region36
        $region35: #{tpu_custom_call.1} parent=11 // pred_region
          %s317 = ssub.s32 4096, 4096
          %318 = vsyncadd [#allocation6], %s317
          %s319 = sshll.u32 [#allocation7], 4
          %s320 = int_to_ptr.vmem [resolvable:$true] %s319
          %325 = dma.hbm_to_vmem [thread:$0]  %s6, 4096, %s320, [#allocation6], 256, 256, 16
        $region36: #{tpu_custom_call.1} parent=11 // pred_fallthru
          _
        // Predicated region
        $region37: #{tpu_custom_call.1} parent=11 // pred_check
          %p326 = pneg %p195
        $region38: #{tpu_custom_call.1} parent=11 // pred_check_branch
          %328 = sbr.rel (%p326) target = $region40
        $region39: #{tpu_custom_call.1} parent=11 // pred_region
          _
        $region40: #{tpu_custom_call.1} parent=11 // pred_fallthru
          _
        // Predicated region
        $region41: #{tpu_custom_call.1} parent=11 // pred_check
          %p329 = pneg %p216
        $region42: #{tpu_custom_call.1} parent=11 // pred_check_branch
          %331 = sbr.rel (%p329) target = $region44
        $region43: #{tpu_custom_call.1} parent=11 // pred_region
          %s333 = ssub.s32 2048, 2048
          %334 = vsyncadd [#allocation9], %s333
          %s335 = sshll.u32 [#allocation8], 4
          %s336 = int_to_ptr.vmem [resolvable:$true] %s335
          %341 = dma.hbm_to_vmem [thread:$0]  %s8, 2048, %s336, [#allocation9], 128, 128, 8
        $region44: #{tpu_custom_call.1} parent=11 // pred_fallthru
          _
        // Predicated region
        $region45: #{tpu_custom_call.1} parent=11 // pred_check
          %p342 = pneg %p237
        $region46: #{tpu_custom_call.1} parent=11 // pred_check_branch
          %344 = sbr.rel (%p342) target = $region48
        $region47: #{tpu_custom_call.1} parent=11 // pred_region
          _
        $region48: #{tpu_custom_call.1} parent=11 // pred_fallthru
          _
      $region12: #{tpu_custom_call.1} parent=5 // pred_fallthru
        _
      %p345 = scmp.lt.s32.totalorder %s22, 2
      // Predicated region
      $region49: #{tpu_custom_call.1} parent=5 // pred_check
        %p346 = pneg %p345
      $region50: #{tpu_custom_call.1} parent=5 // pred_check_branch
        %348 = sbr.rel (%p346) target = $region52
      $region51: #{tpu_custom_call.1} parent=5 // pred_region
        // Predicated region
        $region53: #{tpu_custom_call.1} parent=51 // pred_check
          %p349 = pneg %p42
        $region54: #{tpu_custom_call.1} parent=51 // pred_check_branch
          %351 = sbr.rel (%p349) target = $region56
        $region55: #{tpu_custom_call.1} parent=51 // pred_region
          %s352 = smul.u32 16, %s22
          %p353 = scmp.lt.s32.totalorder %s352, 31
          %s354 = scalar_select %p353, %s352, 31
          %s355 = smul.addr %s354, 8
          %s356 = scalar_lea.vmem %s0, %s355
          %s357 = smul.u32 16, %s22
        $region56: #{tpu_custom_call.1} parent=51 // pred_fallthru
          _
      $region52: #{tpu_custom_call.1} parent=5 // pred_fallthru
        _
      %p358 = scmp.le.s32.totalorder 1, %s22
      %p359 = scmp.lt.s32.totalorder %s22, 3
      %p360 = pnand %p358, %p359
      %p361 = pneg %p360
      // Predicated region
      $region57: #{tpu_custom_call.1} parent=5 // pred_check
        _
      $region58: #{tpu_custom_call.1} parent=5 // pred_check_branch
        %363 = sbr.rel (%p360) target = $region60
      $region59: #{tpu_custom_call.1} parent=5 // pred_region
        %s364 = ssub.s32 %s22, 1
        // Predicated region
        $region61: #{tpu_custom_call.1} parent=59 // pred_check
          %p365 = pneg %p69
        $region62: #{tpu_custom_call.1} parent=59 // pred_check_branch
          %367 = sbr.rel (%p365) target = $region64
        $region63: #{tpu_custom_call.1} parent=59 // pred_region
          %368 = dma.done [#allocation3], 1024
        $region64: #{tpu_custom_call.1} parent=59 // pred_fallthru
          _
        // Predicated region
        $region65: #{tpu_custom_call.1} parent=59 // pred_check
          %p369 = pneg %p132
        $region66: #{tpu_custom_call.1} parent=59 // pred_check_branch
          %371 = sbr.rel (%p369) target = $region68
        $region67: #{tpu_custom_call.1} parent=59 // pred_region
          %372 = dma.done [#allocation6], 2048
        $region68: #{tpu_custom_call.1} parent=59 // pred_fallthru
          _
        // Predicated region
        $region69: #{tpu_custom_call.1} parent=59 // pred_check
          %p373 = pneg %p174
        $region70: #{tpu_custom_call.1} parent=59 // pred_check_branch
          %375 = sbr.rel (%p373) target = $region72
        $region71: #{tpu_custom_call.1} parent=59 // pred_region
          %376 = dma.done [#allocation6], 4096
        $region72: #{tpu_custom_call.1} parent=59 // pred_fallthru
          _
        // Predicated region
        $region73: #{tpu_custom_call.1} parent=59 // pred_check
          %p377 = pneg %p216
        $region74: #{tpu_custom_call.1} parent=59 // pred_check_branch
          %379 = sbr.rel (%p377) target = $region76
        $region75: #{tpu_custom_call.1} parent=59 // pred_region
          %380 = dma.done [#allocation9], 2048
        $region76: #{tpu_custom_call.1} parent=59 // pred_fallthru
          _
        %s381 = smul.u32 16, %s27
        %p382 = scmp.lt.s32.totalorder %s381, 31
        %s383 = scalar_select %p382, %s381, 31
        %s384 = smul.addr %s383, 8
        %s385 = scalar_lea.vmem %s0, %s384
        %p386 = pneg %p48
        %p387 = pneg %p45
        %p388 = pneg %p69
        %p389 = pneg %p66
        %p390 = pneg %p90
        %p391 = pneg %p87
        %p392 = pneg %p111
        %p393 = pneg %p108
        %p394 = pneg %p132
        %p395 = pneg %p129
        %p396 = pneg %p153
        %p397 = pneg %p150
        %p398 = pneg %p174
        %p399 = pneg %p171
        %p400 = pneg %p195
        %p401 = pneg %p192
        %p402 = pneg %p216
        %p403 = pneg %p213
        %p404 = pneg %p237
        %p405 = pneg %p234
        %p406 = pneg %p263
        %p407 = pneg %p260
        %s408 = sand.u32 %s250, 1
        %s409 = scalar_lea.sflag [#allocation4], %s408
        %s410 = sand.u32 %s250, 1
        %s411 = smul.addr %s410, 128
        %s412 = scalar_lea.vmem [#allocation10], %s411
        %s413 = smul.u32 16, %s27
        %p414 = scmp.lt.s32.totalorder %s413, 31
        %s415 = scalar_select %p414, %s413, 31
        %s416 = smul.addr %s415, 8
        %s417 = scalar_lea.vmem %s0, %s416
        %s418 = smul.u32 16, %s27
        %s419 = smul.u32 16, %s27
        %v420 = vld [vmem:[%s417] sm:$0xff]
        %v421 = vld [vmem:[%s417 + $0x8] sm:$0xff]
        %v422 = vld [vmem:[%s417 + $0x10] sm:$0xff]
        %v423 = vld [vmem:[%s417 + $0x18] sm:$0xff]
        %v424 = vld [vmem:[%s417 + $0x20] sm:$0xff]
        %v425 = vld [vmem:[%s417 + $0x28] sm:$0xff]
        %v426 = vld [vmem:[%s417 + $0x30] sm:$0xff]
        %v427 = vld [vmem:[%s417 + $0x38] sm:$0xff]
        %v428 = vld [vmem:[%s417 + $0x40] sm:$0xff]
        %v429 = vld [vmem:[%s417 + $0x48] sm:$0xff]
        %v430 = vld [vmem:[%s417 + $0x50] sm:$0xff]
        %v431 = vld [vmem:[%s417 + $0x58] sm:$0xff]
        %v432 = vld [vmem:[%s417 + $0x60] sm:$0xff]
        %v433 = vld [vmem:[%s417 + $0x68] sm:$0xff]
        %v434 = vld [vmem:[%s417 + $0x70] sm:$0xff]
        %v435 = vld [vmem:[%s417 + $0x78] sm:$0xff]
        %v436 = vld [vmem:[#allocation2] sm:$0xff]
        %v437 = vld [vmem:[#allocation2 + $0x8] sm:$0xff]
        %v438 = vld [vmem:[#allocation2 + $0x10] sm:$0xff]
        %v439 = vld [vmem:[#allocation2 + $0x18] sm:$0xff]
        %v440 = vld [vmem:[#allocation2 + $0x20] sm:$0xff]
        %v441 = vld [vmem:[#allocation2 + $0x28] sm:$0xff]
        %v442 = vld [vmem:[#allocation2 + $0x30] sm:$0xff]
        %v443 = vld [vmem:[#allocation2 + $0x38] sm:$0xff]
        %v444 = vld [vmem:[%s2] sm:$0xf]
        %v446 = vlaneseq
        %v447 = vshrl.u32 %v446, 7
        %v448 = vsub.s32 0, %v447
        %v449 = vrot.slane %v444, %v448
        %v450 = vlaneseq
        %v451 = vshrl.u32 %v450, 7
        %v452 = vsub.s32 1, %v451
        %v453 = vrot.slane %v444, %v452
        %v454 = vlaneseq
        %v455 = vshrl.u32 %v454, 7
        %v456 = vsub.s32 2, %v455
        %v457 = vrot.slane %v444, %v456
        %v458 = vlaneseq
        %v459 = vshrl.u32 %v458, 7
        %v460 = vsub.s32 3, %v459
        %v461 = vrot.slane %v444, %v460
        %vm466 = vcmask 130048
        %v468 = vsel %vm466, %v420, 0
        %v471 = vsel %vm466, %v421, 0
        %v474 = vsel %vm466, %v422, 0
        %v477 = vsel %vm466, %v423, 0
        %v480 = vsel %vm466, %v424, 0
        %v483 = vsel %vm466, %v425, 0
        %v486 = vsel %vm466, %v426, 0
        %v489 = vsel %vm466, %v427, 0
        %v492 = vsel %vm466, %v428, 0
        %v495 = vsel %vm466, %v429, 0
        %v498 = vsel %vm466, %v430, 0
        %v501 = vsel %vm466, %v431, 0
        %v504 = vsel %vm466, %v432, 0
        %v507 = vsel %vm466, %v433, 0
        %v510 = vsel %vm466, %v434, 0
        %v513 = vsel %vm466, %v435, 0
        %515 = vmatprep.subr.mxu0 %v437
        %516 = vmatpush1.msra.mxu0 %v436
        %517 = vmatprep.subr.mxu0 %v441
        %518 = vmatpush1.msra.mxu0 %v440
        %519 = vmatprep.subr.mxu0 0.0
        %520 = vmatpush1.msra.mxu0 0.0
        %521 = vmatprep.subr.mxu0 0.0
        %522 = vmatpush1.msra.mxu0 0.0
        %523 = vmatprep.subr.mxu0 0.0
        %524 = vmatpush1.msra.mxu0 0.0
        %525 = vmatprep.subr.mxu0 0.0
        %526 = vmatpush1.msra.mxu0 0.0
        %527 = vmatprep.subr.mxu0 0.0
        %528 = vmatpush1.msra.mxu0 0.0
        %529 = vmatprep.subr.mxu0 0.0
        %530 = vmatpush1.msra.mxu0 0.0
        %531 = vmatprep.subr.mxu0 0.0
        %532 = vmatpush1.msra.mxu0 0.0
        %533 = vmatprep.subr.mxu0 0.0
        %534 = vmatpush1.msra.mxu0 0.0
        %535 = vmatprep.subr.mxu0 0.0
        %536 = vmatpush1.msra.mxu0 0.0
        %537 = vmatprep.subr.mxu0 0.0
        %538 = vmatpush1.msra.mxu0 0.0
        %539 = vmatprep.subr.mxu0 0.0
        %540 = vmatpush1.msra.mxu0 0.0
        %541 = vmatprep.subr.mxu0 0.0
        %542 = vmatpush1.msra.mxu0 0.0
        %543 = vmatprep.subr.mxu0 0.0
        %544 = vmatpush1.msra.mxu0 0.0
        %545 = vmatprep.subr.mxu0 0.0
        %546 = vmatpush1.msra.mxu0 0.0
        %547 = vmatprep.subr.mxu0 0.0
        %548 = vmatpush1.msra.mxu0 0.0
        %549 = vmatprep.subr.mxu0 0.0
        %550 = vmatpush1.msra.mxu0 0.0
        %551 = vmatprep.subr.mxu0 0.0
        %552 = vmatpush1.msra.mxu0 0.0
        %553 = vmatprep.subr.mxu0 0.0
        %554 = vmatpush1.msra.mxu0 0.0
        %555 = vmatprep.subr.mxu0 0.0
        %556 = vmatpush1.msra.mxu0 0.0
        %557 = vmatprep.subr.mxu0 0.0
        %558 = vmatpush1.msra.mxu0 0.0
        %559 = vmatprep.subr.mxu0 0.0
        %560 = vmatpush1.msra.mxu0 0.0
        %561 = vmatprep.subr.mxu0 0.0
        %562 = vmatpush1.msra.mxu0 0.0
        %563 = vmatprep.subr.mxu0 0.0
        %564 = vmatpush1.msra.mxu0 0.0
        %565 = vmatprep.subr.mxu0 0.0
        %566 = vmatpush1.msra.mxu0 0.0
        %567 = vmatprep.subr.mxu0 0.0
        %568 = vmatpush1.msra.mxu0 0.0
        %569 = vmatprep.subr.mxu0 0.0
        %570 = vmatpush1.msra.mxu0 0.0
        %571 = vmatprep.subr.mxu0 0.0
        %572 = vmatpush1.msra.mxu0 0.0
        %573 = vmatprep.subr.mxu0 0.0
        %574 = vmatpush1.msra.mxu0 0.0
        %575 = vmatprep.subr.mxu0 0.0
        %576 = vmatpush1.msra.mxu0 0.0
        %577 = vmatprep.subr.mxu0 0.0
        %578 = vmatpush1.msra.mxu0 0.0
        %579 = vmatprep.mubr.f32.mxu0 0.0
        %580 = vmatmul.mubr.f32.gmra.mrb[0].mxu0 %v468
        %v581 = vpop.f32.mrb[0].mxu0
        %v582 = vadd.f32 %v449, %v581
        %v583 = vpop.f32.mrb[0].mxu0
        %v584 = vadd.f32 %v453, %v583
        %585 = vmatprep.mubr.f32.mxu0 0.0
        %586 = vmatmul.mubr.f32.gmra.mrb[0].mxu0 %v471
        %v587 = vpop.f32.mrb[0].mxu0
        %v588 = vadd.f32 %v449, %v587
        %v589 = vpop.f32.mrb[0].mxu0
        %v590 = vadd.f32 %v453, %v589
        %591 = vmatprep.mubr.f32.mxu0 0.0
        %592 = vmatmul.mubr.f32.gmra.mrb[0].mxu0 %v474
        %v593 = vpop.f32.mrb[0].mxu0
        %v594 = vadd.f32 %v449, %v593
        %v595 = vpop.f32.mrb[0].mxu0
        %v596 = vadd.f32 %v453, %v595
        %597 = vmatprep.mubr.f32.mxu0 0.0
        %598 = vmatmul.mubr.f32.gmra.mrb[0].mxu0 %v477
        %v599 = vpop.f32.mrb[0].mxu0
        %v600 = vadd.f32 %v449, %v599
        %v601 = vpop.f32.mrb[0].mxu0
        %v602 = vadd.f32 %v453, %v601
        %603 = vmatprep.mubr.f32.mxu0 0.0
        %604 = vmatmul.mubr.f32.gmra.mrb[0].mxu0 %v480
        %v605 = vpop.f32.mrb[0].mxu0
        %v606 = vadd.f32 %v449, %v605
        %v607 = vpop.f32.mrb[0].mxu0
        %v608 = vadd.f32 %v453, %v607
        %609 = vmatprep.mubr.f32.mxu0 0.0
        %610 = vmatmul.mubr.f32.gmra.mrb[0].mxu0 %v483
        %v611 = vpop.f32.mrb[0].mxu0
        %v612 = vadd.f32 %v449, %v611
        %v613 = vpop.f32.mrb[0].mxu0
        %v614 = vadd.f32 %v453, %v613
        %615 = vmatprep.mubr.f32.mxu0 0.0
        %616 = vmatmul.mubr.f32.gmra.mrb[0].mxu0 %v486
        %v617 = vpop.f32.mrb[0].mxu0
        %v618 = vadd.f32 %v449, %v617
        %v619 = vpop.f32.mrb[0].mxu0
        %v620 = vadd.f32 %v453, %v619
        %621 = vmatprep.mubr.f32.mxu0 0.0
        %622 = vmatmul.mubr.f32.gmra.mrb[0].mxu0 %v489
        %v623 = vpop.f32.mrb[0].mxu0
        %v624 = vadd.f32 %v449, %v623
        %v625 = vpop.f32.mrb[0].mxu0
        %v626 = vadd.f32 %v453, %v625
        %627 = vmatprep.mubr.f32.mxu0 0.0
        %628 = vmatmul.mubr.f32.gmra.mrb[0].mxu0 %v492
        %v629 = vpop.f32.mrb[0].mxu0
        %v630 = vadd.f32 %v449, %v629
        %v631 = vpop.f32.mrb[0].mxu0
        %v632 = vadd.f32 %v453, %v631
        %633 = vmatprep.mubr.f32.mxu0 0.0
        %634 = vmatmul.mubr.f32.gmra.mrb[0].mxu0 %v495
        %v635 = vpop.f32.mrb[0].mxu0
        %v636 = vadd.f32 %v449, %v635
        %v637 = vpop.f32.mrb[0].mxu0
        %v638 = vadd.f32 %v453, %v637
        %639 = vmatprep.mubr.f32.mxu0 0.0
        %640 = vmatmul.mubr.f32.gmra.mrb[0].mxu0 %v498
        %v641 = vpop.f32.mrb[0].mxu0
        %v642 = vadd.f32 %v449, %v641
        %v643 = vpop.f32.mrb[0].mxu0
        %v644 = vadd.f32 %v453, %v643
        %645 = vmatprep.mubr.f32.mxu0 0.0
        %646 = vmatmul.mubr.f32.gmra.mrb[0].mxu0 %v501
        %v647 = vpop.f32.mrb[0].mxu0
        %v648 = vadd.f32 %v449, %v647
        %v649 = vpop.f32.mrb[0].mxu0
        %v650 = vadd.f32 %v453, %v649
        %651 = vmatprep.mubr.f32.mxu0 0.0
        %652 = vmatmul.mubr.f32.gmra.mrb[0].mxu0 %v504
        %v653 = vpop.f32.mrb[0].mxu0
        %v654 = vadd.f32 %v449, %v653
        %v655 = vpop.f32.mrb[0].mxu0
        %v656 = vadd.f32 %v453, %v655
        %657 = vmatprep.mubr.f32.mxu0 0.0
        %658 = vmatmul.mubr.f32.gmra.mrb[0].mxu0 %v507
        %v659 = vpop.f32.mrb[0].mxu0
        %v660 = vadd.f32 %v449, %v659
        %v661 = vpop.f32.mrb[0].mxu0
        %v662 = vadd.f32 %v453, %v661
        %663 = vmatprep.mubr.f32.mxu0 0.0
        %664 = vmatmul.mubr.f32.gmra.mrb[0].mxu0 %v510
        %v665 = vpop.f32.mrb[0].mxu0
        %v666 = vadd.f32 %v449, %v665
        %v667 = vpop.f32.mrb[0].mxu0
        %v668 = vadd.f32 %v453, %v667
        %669 = vmatprep.mubr.f32.mxu0 0.0
        %670 = vmatmul.mubr.f32.gmra.mrb[0].mxu0 %v513
        %v671 = vpop.f32.mrb[0].mxu0
        %v672 = vadd.f32 %v449, %v671
        %v673 = vpop.f32.mrb[0].mxu0
        %v674 = vadd.f32 %v453, %v673
        %675 = vdwg.mxu0
        %676 = vmatprep.subr.mxu0 %v439
        %677 = vmatpush1.msra.mxu0 %v438
        %678 = vmatprep.subr.mxu0 %v443
        %679 = vmatpush1.msra.mxu0 %v442
        %680 = vmatprep.subr.mxu0 0.0
        %681 = vmatpush1.msra.mxu0 0.0
        %682 = vmatprep.subr.mxu0 0.0
        %683 = vmatpush1.msra.mxu0 0.0
        %684 = vmatprep.subr.mxu0 0.0
        %685 = vmatpush1.msra.mxu0 0.0
        %686 = vmatprep.subr.mxu0 0.0
        %687 = vmatpush1.msra.mxu0 0.0
        %688 = vmatprep.subr.mxu0 0.0
        %689 = vmatpush1.msra.mxu0 0.0
        %690 = vmatprep.subr.mxu0 0.0
        %691 = vmatpush1.msra.mxu0 0.0
        %692 = vmatprep.subr.mxu0 0.0
        %693 = vmatpush1.msra.mxu0 0.0
        %694 = vmatprep.subr.mxu0 0.0
        %695 = vmatpush1.msra.mxu0 0.0
        %696 = vmatprep.subr.mxu0 0.0
        %697 = vmatpush1.msra.mxu0 0.0
        %698 = vmatprep.subr.mxu0 0.0
        %699 = vmatpush1.msra.mxu0 0.0
        %700 = vmatprep.subr.mxu0 0.0
        %701 = vmatpush1.msra.mxu0 0.0
        %702 = vmatprep.subr.mxu0 0.0
        %703 = vmatpush1.msra.mxu0 0.0
        %704 = vmatprep.subr.mxu0 0.0
        %705 = vmatpush1.msra.mxu0 0.0
        %706 = vmatprep.subr.mxu0 0.0
        %707 = vmatpush1.msra.mxu0 0.0
        %708 = vmatprep.subr.mxu0 0.0
        %709 = vmatpush1.msra.mxu0 0.0
        %710 = vmatprep.subr.mxu0 0.0
        %711 = vmatpush1.msra.mxu0 0.0
        %712 = vmatprep.subr.mxu0 0.0
        %713 = vmatpush1.msra.mxu0 0.0
        %714 = vmatprep.subr.mxu0 0.0
        %715 = vmatpush1.msra.mxu0 0.0
        %716 = vmatprep.subr.mxu0 0.0
        %717 = vmatpush1.msra.mxu0 0.0
        %718 = vmatprep.subr.mxu0 0.0
        %719 = vmatpush1.msra.mxu0 0.0
        %720 = vmatprep.subr.mxu0 0.0
        %721 = vmatpush1.msra.mxu0 0.0
        %722 = vmatprep.subr.mxu0 0.0
        %723 = vmatpush1.msra.mxu0 0.0
        %724 = vmatprep.subr.mxu0 0.0
        %725 = vmatpush1.msra.mxu0 0.0
        %726 = vmatprep.subr.mxu0 0.0
        %727 = vmatpush1.msra.mxu0 0.0
        %728 = vmatprep.subr.mxu0 0.0
        %729 = vmatpush1.msra.mxu0 0.0
        %730 = vmatprep.subr.mxu0 0.0
        %731 = vmatpush1.msra.mxu0 0.0
        %732 = vmatprep.subr.mxu0 0.0
        %733 = vmatpush1.msra.mxu0 0.0
        %734 = vmatprep.subr.mxu0 0.0
        %735 = vmatpush1.msra.mxu0 0.0
        %736 = vmatprep.subr.mxu0 0.0
        %737 = vmatpush1.msra.mxu0 0.0
        %738 = vmatprep.subr.mxu0 0.0
        %739 = vmatpush1.msra.mxu0 0.0
        %740 = vmatprep.mubr.f32.mxu0 0.0
        %741 = vmatmul.mubr.f32.gmra.mrb[0].mxu0 %v468
        %v742 = vpop.f32.mrb[0].mxu0
        %v743 = vadd.f32 %v457, %v742
        %v744 = vpop.f32.mrb[0].mxu0
        %v745 = vadd.f32 %v461, %v744
        %746 = vmatprep.mubr.f32.mxu0 0.0
        %747 = vmatmul.mubr.f32.gmra.mrb[0].mxu0 %v471
        %v748 = vpop.f32.mrb[0].mxu0
        %v749 = vadd.f32 %v457, %v748
        %v750 = vpop.f32.mrb[0].mxu0
        %v751 = vadd.f32 %v461, %v750
        %752 = vmatprep.mubr.f32.mxu0 0.0
        %753 = vmatmul.mubr.f32.gmra.mrb[0].mxu0 %v474
        %v754 = vpop.f32.mrb[0].mxu0
        %v755 = vadd.f32 %v457, %v754
        %v756 = vpop.f32.mrb[0].mxu0
        %v757 = vadd.f32 %v461, %v756
        %758 = vmatprep.mubr.f32.mxu0 0.0
        %759 = vmatmul.mubr.f32.gmra.mrb[0].mxu0 %v477
        %v760 = vpop.f32.mrb[0].mxu0
        %v761 = vadd.f32 %v457, %v760
        %v762 = vpop.f32.mrb[0].mxu0
        %v763 = vadd.f32 %v461, %v762
        %764 = vmatprep.mubr.f32.mxu0 0.0
        %765 = vmatmul.mubr.f32.gmra.mrb[0].mxu0 %v480
        %v766 = vpop.f32.mrb[0].mxu0
        %v767 = vadd.f32 %v457, %v766
        %v768 = vpop.f32.mrb[0].mxu0
        %v769 = vadd.f32 %v461, %v768
        %770 = vmatprep.mubr.f32.mxu0 0.0
        %771 = vmatmul.mubr.f32.gmra.mrb[0].mxu0 %v483
        %v772 = vpop.f32.mrb[0].mxu0
        %v773 = vadd.f32 %v457, %v772
        %v774 = vpop.f32.mrb[0].mxu0
        %v775 = vadd.f32 %v461, %v774
        %776 = vmatprep.mubr.f32.mxu0 0.0
        %777 = vmatmul.mubr.f32.gmra.mrb[0].mxu0 %v486
        %v778 = vpop.f32.mrb[0].mxu0
        %v779 = vadd.f32 %v457, %v778
        %v780 = vpop.f32.mrb[0].mxu0
        %v781 = vadd.f32 %v461, %v780
        %782 = vmatprep.mubr.f32.mxu0 0.0
        %783 = vmatmul.mubr.f32.gmra.mrb[0].mxu0 %v489
        %v784 = vpop.f32.mrb[0].mxu0
        %v785 = vadd.f32 %v457, %v784
        %v786 = vpop.f32.mrb[0].mxu0
        %v787 = vadd.f32 %v461, %v786
        %788 = vmatprep.mubr.f32.mxu0 0.0
        %789 = vmatmul.mubr.f32.gmra.mrb[0].mxu0 %v492
        %v790 = vpop.f32.mrb[0].mxu0
        %v791 = vadd.f32 %v457, %v790
        %v792 = vpop.f32.mrb[0].mxu0
        %v793 = vadd.f32 %v461, %v792
        %794 = vmatprep.mubr.f32.mxu0 0.0
        %795 = vmatmul.mubr.f32.gmra.mrb[0].mxu0 %v495
        %v796 = vpop.f32.mrb[0].mxu0
        %v797 = vadd.f32 %v457, %v796
        %v798 = vpop.f32.mrb[0].mxu0
        %v799 = vadd.f32 %v461, %v798
        %800 = vmatprep.mubr.f32.mxu0 0.0
        %801 = vmatmul.mubr.f32.gmra.mrb[0].mxu0 %v498
        %v802 = vpop.f32.mrb[0].mxu0
        %v803 = vadd.f32 %v457, %v802
        %v804 = vpop.f32.mrb[0].mxu0
        %v805 = vadd.f32 %v461, %v804
        %806 = vmatprep.mubr.f32.mxu0 0.0
        %807 = vmatmul.mubr.f32.gmra.mrb[0].mxu0 %v501
        %v808 = vpop.f32.mrb[0].mxu0
        %v809 = vadd.f32 %v457, %v808
        %v810 = vpop.f32.mrb[0].mxu0
        %v811 = vadd.f32 %v461, %v810
        %812 = vmatprep.mubr.f32.mxu0 0.0
        %813 = vmatmul.mubr.f32.gmra.mrb[0].mxu0 %v504
        %v814 = vpop.f32.mrb[0].mxu0
        %v815 = vadd.f32 %v457, %v814
        %v816 = vpop.f32.mrb[0].mxu0
        %v817 = vadd.f32 %v461, %v816
        %818 = vmatprep.mubr.f32.mxu0 0.0
        %819 = vmatmul.mubr.f32.gmra.mrb[0].mxu0 %v507
        %v820 = vpop.f32.mrb[0].mxu0
        %v821 = vadd.f32 %v457, %v820
        %v822 = vpop.f32.mrb[0].mxu0
        %v823 = vadd.f32 %v461, %v822
        %824 = vmatprep.mubr.f32.mxu0 0.0
        %825 = vmatmul.mubr.f32.gmra.mrb[0].mxu0 %v510
        %v826 = vpop.f32.mrb[0].mxu0
        %v827 = vadd.f32 %v457, %v826
        %v828 = vpop.f32.mrb[0].mxu0
        %v829 = vadd.f32 %v461, %v828
        %830 = vmatprep.mubr.f32.mxu0 0.0
        %831 = vmatmul.mubr.f32.gmra.mrb[0].mxu0 %v513
        %v832 = vpop.f32.mrb[0].mxu0
        %v833 = vadd.f32 %v457, %v832
        %v834 = vpop.f32.mrb[0].mxu0
        %v835 = vadd.f32 %v461, %v834
        %836 = vdwg.mxu0
        %v837 = vtanh.pop %v582
        %v838 = vtanh.pop %v588
        %v839 = vtanh.pop %v594
        %v840 = vtanh.pop %v600
        %v841 = vtanh.pop %v606
        %v842 = vtanh.pop %v612
        %v843 = vtanh.pop %v618
        %v844 = vtanh.pop %v624
        %v845 = vtanh.pop %v630
        %v846 = vtanh.pop %v636
        %v847 = vtanh.pop %v642
        %v848 = vtanh.pop %v648
        %v849 = vtanh.pop %v654
        %v850 = vtanh.pop %v660
        %v851 = vtanh.pop %v666
        %v852 = vtanh.pop %v672
        %v853 = vxor.u32 %v584, 2147483648
        %v854 = vxor.u32 %v590, 2147483648
        %v855 = vxor.u32 %v596, 2147483648
        %v856 = vxor.u32 %v602, 2147483648
        %v857 = vxor.u32 %v608, 2147483648
        %v858 = vxor.u32 %v614, 2147483648
        %v859 = vxor.u32 %v620, 2147483648
        %v860 = vxor.u32 %v626, 2147483648
        %v861 = vxor.u32 %v632, 2147483648
        %v862 = vxor.u32 %v638, 2147483648
        %v863 = vxor.u32 %v644, 2147483648
        %v864 = vxor.u32 %v650, 2147483648
        %v865 = vxor.u32 %v656, 2147483648
        %v866 = vxor.u32 %v662, 2147483648
        %v867 = vxor.u32 %v668, 2147483648
        %v868 = vxor.u32 %v674, 2147483648
        %v869 = vmul.f32 %v853, 1.442695
        %v870 = vpow.pop %v869
        %v871 = vmul.f32 %v854, 1.442695
        %v872 = vpow.pop %v871
        %v873 = vmul.f32 %v855, 1.442695
        %v874 = vpow.pop %v873
        %v875 = vmul.f32 %v856, 1.442695
        %v876 = vpow.pop %v875
        %v877 = vmul.f32 %v857, 1.442695
        %v878 = vpow.pop %v877
        %v879 = vmul.f32 %v858, 1.442695
        %v880 = vpow.pop %v879
        %v881 = vmul.f32 %v859, 1.442695
        %v882 = vpow.pop %v881
        %v883 = vmul.f32 %v860, 1.442695
        %v884 = vpow.pop %v883
        %v885 = vmul.f32 %v861, 1.442695
        %v886 = vpow.pop %v885
        %v887 = vmul.f32 %v862, 1.442695
        %v888 = vpow.pop %v887
        %v889 = vmul.f32 %v863, 1.442695
        %v890 = vpow.pop %v889
        %v891 = vmul.f32 %v864, 1.442695
        %v892 = vpow.pop %v891
        %v893 = vmul.f32 %v865, 1.442695
        %v894 = vpow.pop %v893
        %v895 = vmul.f32 %v866, 1.442695
        %v896 = vpow.pop %v895
        %v897 = vmul.f32 %v867, 1.442695
        %v898 = vpow.pop %v897
        %v899 = vmul.f32 %v868, 1.442695
        %v900 = vpow.pop %v899
        %v901 = vadd.f32 %v870, 1.0
        %v902 = vadd.f32 %v872, 1.0
        %v903 = vadd.f32 %v874, 1.0
        %v904 = vadd.f32 %v876, 1.0
        %v905 = vadd.f32 %v878, 1.0
        %v906 = vadd.f32 %v880, 1.0
        %v907 = vadd.f32 %v882, 1.0
        %v908 = vadd.f32 %v884, 1.0
        %v909 = vadd.f32 %v886, 1.0
        %v910 = vadd.f32 %v888, 1.0
        %v911 = vadd.f32 %v890, 1.0
        %v912 = vadd.f32 %v892, 1.0
        %v913 = vadd.f32 %v894, 1.0
        %v914 = vadd.f32 %v896, 1.0
        %v915 = vadd.f32 %v898, 1.0
        %v916 = vadd.f32 %v900, 1.0
        %v917 = vrcp.pop %v901
        %v918 = vmul.f32 1.0, %v917
        %v919 = vrcp.pop %v902
        %v920 = vmul.f32 1.0, %v919
        %v921 = vrcp.pop %v903
        %v922 = vmul.f32 1.0, %v921
        %v923 = vrcp.pop %v904
        %v924 = vmul.f32 1.0, %v923
        %v925 = vrcp.pop %v905
        %v926 = vmul.f32 1.0, %v925
        %v927 = vrcp.pop %v906
        %v928 = vmul.f32 1.0, %v927
        %v929 = vrcp.pop %v907
        %v930 = vmul.f32 1.0, %v929
        %v931 = vrcp.pop %v908
        %v932 = vmul.f32 1.0, %v931
        %v933 = vrcp.pop %v909
        %v934 = vmul.f32 1.0, %v933
        %v935 = vrcp.pop %v910
        %v936 = vmul.f32 1.0, %v935
        %v937 = vrcp.pop %v911
        %v938 = vmul.f32 1.0, %v937
        %v939 = vrcp.pop %v912
        %v940 = vmul.f32 1.0, %v939
        %v941 = vrcp.pop %v913
        %v942 = vmul.f32 1.0, %v941
        %v943 = vrcp.pop %v914
        %v944 = vmul.f32 1.0, %v943
        %v945 = vrcp.pop %v915
        %v946 = vmul.f32 1.0, %v945
        %v947 = vrcp.pop %v916
        %v948 = vmul.f32 1.0, %v947
        %v949 = vmul.f32 %v837, %v918
        %v950 = vmul.f32 %v838, %v920
        %v951 = vmul.f32 %v839, %v922
        %v952 = vmul.f32 %v840, %v924
        %v953 = vmul.f32 %v841, %v926
        %v954 = vmul.f32 %v842, %v928
        %v955 = vmul.f32 %v843, %v930
        %v956 = vmul.f32 %v844, %v932
        %v957 = vmul.f32 %v845, %v934
        %v958 = vmul.f32 %v846, %v936
        %v959 = vmul.f32 %v847, %v938
        %v960 = vmul.f32 %v848, %v940
        %v961 = vmul.f32 %v849, %v942
        %v962 = vmul.f32 %v850, %v944
        %v963 = vmul.f32 %v851, %v946
        %v964 = vmul.f32 %v852, %v948
        %v965 = vld [vmem:[%s3] sm:$0xff]
        %v966 = vld [vmem:[%s3 + $0x8] sm:$0xff]
        %v967 = vld [vmem:[%s3 + $0x10] sm:$0xff]
        %v968 = vld [vmem:[%s3 + $0x18] sm:$0xff]
        %v969 = vld [vmem:[%s3 + $0x20] sm:$0xff]
        %v970 = vld [vmem:[%s3 + $0x28] sm:$0xff]
        %v971 = vld [vmem:[%s3 + $0x30] sm:$0xff]
        %v972 = vld [vmem:[%s3 + $0x38] sm:$0xff]
        %v973 = vld [vmem:[%s3 + $0x40] sm:$0xff]
        %v974 = vld [vmem:[%s3 + $0x48] sm:$0xff]
        %v975 = vld [vmem:[%s3 + $0x50] sm:$0xff]
        %v976 = vld [vmem:[%s3 + $0x58] sm:$0xff]
        %v977 = vld [vmem:[%s3 + $0x60] sm:$0xff]
        %v978 = vld [vmem:[%s3 + $0x68] sm:$0xff]
        %v979 = vld [vmem:[%s3 + $0x70] sm:$0xff]
        %v980 = vld [vmem:[%s3 + $0x78] sm:$0xff]
        %v981 = vld [vmem:[%s3 + $0x80] sm:$0xff]
        %v982 = vld [vmem:[%s3 + $0x88] sm:$0xff]
        %v983 = vld [vmem:[%s3 + $0x90] sm:$0xff]
        %v984 = vld [vmem:[%s3 + $0x98] sm:$0xff]
        %v985 = vld [vmem:[%s3 + $0xa0] sm:$0xff]
        %v986 = vld [vmem:[%s3 + $0xa8] sm:$0xff]
        %v987 = vld [vmem:[%s3 + $0xb0] sm:$0xff]
        %v988 = vld [vmem:[%s3 + $0xb8] sm:$0xff]
        %v989 = vld [vmem:[%s3 + $0xc0] sm:$0xff]
        %v990 = vld [vmem:[%s3 + $0xc8] sm:$0xff]
        %v991 = vld [vmem:[%s3 + $0xd0] sm:$0xff]
        %v992 = vld [vmem:[%s3 + $0xd8] sm:$0xff]
        %v993 = vld [vmem:[%s3 + $0xe0] sm:$0xff]
        %v994 = vld [vmem:[%s3 + $0xe8] sm:$0xff]
        %v995 = vld [vmem:[%s3 + $0xf0] sm:$0xff]
        %v996 = vld [vmem:[%s3 + $0xf8] sm:$0xff]
        %997 = vmatprep.subr.mxu0 %v966
        %998 = vmatpush1.msra.mxu0 %v965
        %999 = vmatprep.subr.mxu0 %v968
        %1000 = vmatpush1.msra.mxu0 %v967
        %1001 = vmatprep.subr.mxu0 %v970
        %1002 = vmatpush1.msra.mxu0 %v969
        %1003 = vmatprep.subr.mxu0 %v972
        %1004 = vmatpush1.msra.mxu0 %v971
        %1005 = vmatprep.subr.mxu0 %v974
        %1006 = vmatpush1.msra.mxu0 %v973
        %1007 = vmatprep.subr.mxu0 %v976
        %1008 = vmatpush1.msra.mxu0 %v975
        %1009 = vmatprep.subr.mxu0 %v978
        %1010 = vmatpush1.msra.mxu0 %v977
        %1011 = vmatprep.subr.mxu0 %v980
        %1012 = vmatpush1.msra.mxu0 %v979
        %1013 = vmatprep.subr.mxu0 %v982
        %1014 = vmatpush1.msra.mxu0 %v981
        %1015 = vmatprep.subr.mxu0 %v984
        %1016 = vmatpush1.msra.mxu0 %v983
        %1017 = vmatprep.subr.mxu0 %v986
        %1018 = vmatpush1.msra.mxu0 %v985
        %1019 = vmatprep.subr.mxu0 %v988
        %1020 = vmatpush1.msra.mxu0 %v987
        %1021 = vmatprep.subr.mxu0 %v990
        %1022 = vmatpush1.msra.mxu0 %v989
        %1023 = vmatprep.subr.mxu0 %v992
        %1024 = vmatpush1.msra.mxu0 %v991
        %1025 = vmatprep.subr.mxu0 %v994
        %1026 = vmatpush1.msra.mxu0 %v993
        %1027 = vmatprep.subr.mxu0 %v996
        %1028 = vmatpush1.msra.mxu0 %v995
        %1029 = vmatprep.subr.mxu0 0.0
        %1030 = vmatpush1.msra.mxu0 0.0
        %1031 = vmatprep.subr.mxu0 0.0
        %1032 = vmatpush1.msra.mxu0 0.0
        %1033 = vmatprep.subr.mxu0 0.0
        %1034 = vmatpush1.msra.mxu0 0.0
        %1035 = vmatprep.subr.mxu0 0.0
        %1036 = vmatpush1.msra.mxu0 0.0
        %1037 = vmatprep.subr.mxu0 0.0
        %1038 = vmatpush1.msra.mxu0 0.0
        %1039 = vmatprep.subr.mxu0 0.0
        %1040 = vmatpush1.msra.mxu0 0.0
        %1041 = vmatprep.subr.mxu0 0.0
        %1042 = vmatpush1.msra.mxu0 0.0
        %1043 = vmatprep.subr.mxu0 0.0
        %1044 = vmatpush1.msra.mxu0 0.0
        %1045 = vmatprep.subr.mxu0 0.0
        %1046 = vmatpush1.msra.mxu0 0.0
        %1047 = vmatprep.subr.mxu0 0.0
        %1048 = vmatpush1.msra.mxu0 0.0
        %1049 = vmatprep.subr.mxu0 0.0
        %1050 = vmatpush1.msra.mxu0 0.0
        %1051 = vmatprep.subr.mxu0 0.0
        %1052 = vmatpush1.msra.mxu0 0.0
        %1053 = vmatprep.subr.mxu0 0.0
        %1054 = vmatpush1.msra.mxu0 0.0
        %1055 = vmatprep.subr.mxu0 0.0
        %1056 = vmatpush1.msra.mxu0 0.0
        %1057 = vmatprep.subr.mxu0 0.0
        %1058 = vmatpush1.msra.mxu0 0.0
        %1059 = vmatprep.subr.mxu0 0.0
        %1060 = vmatpush1.msra.mxu0 0.0
        %1061 = vmatprep.mubr.f32.mxu0 0.0
        %1062 = vmatmul.mubr.f32.gmra.mrb[0].mxu0 %v949
        %v1063 = vpop.f32.mrb[0].mxu0
        %v1064 = vadd.f32 0.0, %v1063
        %v1065 = vpop.f32.mrb[0].mxu0
        %v1066 = vadd.f32 0.0, %v1065
        %1067 = vmatprep.mubr.f32.mxu0 0.0
        %1068 = vmatmul.mubr.f32.gmra.mrb[0].mxu0 %v950
        %v1069 = vpop.f32.mrb[0].mxu0
        %v1070 = vadd.f32 0.0, %v1069
        %v1071 = vpop.f32.mrb[0].mxu0
        %v1072 = vadd.f32 0.0, %v1071
        %1073 = vmatprep.mubr.f32.mxu0 0.0
        %1074 = vmatmul.mubr.f32.gmra.mrb[0].mxu0 %v951
        %v1075 = vpop.f32.mrb[0].mxu0
        %v1076 = vadd.f32 0.0, %v1075
        %v1077 = vpop.f32.mrb[0].mxu0
        %v1078 = vadd.f32 0.0, %v1077
        %1079 = vmatprep.mubr.f32.mxu0 0.0
        %1080 = vmatmul.mubr.f32.gmra.mrb[0].mxu0 %v952
        %v1081 = vpop.f32.mrb[0].mxu0
        %v1082 = vadd.f32 0.0, %v1081
        %v1083 = vpop.f32.mrb[0].mxu0
        %v1084 = vadd.f32 0.0, %v1083
        %1085 = vmatprep.mubr.f32.mxu0 0.0
        %1086 = vmatmul.mubr.f32.gmra.mrb[0].mxu0 %v953
        %v1087 = vpop.f32.mrb[0].mxu0
        %v1088 = vadd.f32 0.0, %v1087
        %v1089 = vpop.f32.mrb[0].mxu0
        %v1090 = vadd.f32 0.0, %v1089
        %1091 = vmatprep.mubr.f32.mxu0 0.0
        %1092 = vmatmul.mubr.f32.gmra.mrb[0].mxu0 %v954
        %v1093 = vpop.f32.mrb[0].mxu0
        %v1094 = vadd.f32 0.0, %v1093
        %v1095 = vpop.f32.mrb[0].mxu0
        %v1096 = vadd.f32 0.0, %v1095
        %1097 = vmatprep.mubr.f32.mxu0 0.0
        %1098 = vmatmul.mubr.f32.gmra.mrb[0].mxu0 %v955
        %v1099 = vpop.f32.mrb[0].mxu0
        %v1100 = vadd.f32 0.0, %v1099
        %v1101 = vpop.f32.mrb[0].mxu0
        %v1102 = vadd.f32 0.0, %v1101
        %1103 = vmatprep.mubr.f32.mxu0 0.0
        %1104 = vmatmul.mubr.f32.gmra.mrb[0].mxu0 %v956
        %v1105 = vpop.f32.mrb[0].mxu0
        %v1106 = vadd.f32 0.0, %v1105
        %v1107 = vpop.f32.mrb[0].mxu0
        %v1108 = vadd.f32 0.0, %v1107
        %1109 = vmatprep.mubr.f32.mxu0 0.0
        %1110 = vmatmul.mubr.f32.gmra.mrb[0].mxu0 %v957
        %v1111 = vpop.f32.mrb[0].mxu0
        %v1112 = vadd.f32 0.0, %v1111
        %v1113 = vpop.f32.mrb[0].mxu0
        %v1114 = vadd.f32 0.0, %v1113
        %1115 = vmatprep.mubr.f32.mxu0 0.0
        %1116 = vmatmul.mubr.f32.gmra.mrb[0].mxu0 %v958
        %v1117 = vpop.f32.mrb[0].mxu0
        %v1118 = vadd.f32 0.0, %v1117
        %v1119 = vpop.f32.mrb[0].mxu0
        %v1120 = vadd.f32 0.0, %v1119
        %1121 = vmatprep.mubr.f32.mxu0 0.0
        %1122 = vmatmul.mubr.f32.gmra.mrb[0].mxu0 %v959
        %v1123 = vpop.f32.mrb[0].mxu0
        %v1124 = vadd.f32 0.0, %v1123
        %v1125 = vpop.f32.mrb[0].mxu0
        %v1126 = vadd.f32 0.0, %v1125
        %1127 = vmatprep.mubr.f32.mxu0 0.0
        %1128 = vmatmul.mubr.f32.gmra.mrb[0].mxu0 %v960
        %v1129 = vpop.f32.mrb[0].mxu0
        %v1130 = vadd.f32 0.0, %v1129
        %v1131 = vpop.f32.mrb[0].mxu0
        %v1132 = vadd.f32 0.0, %v1131
        %1133 = vmatprep.mubr.f32.mxu0 0.0
        %1134 = vmatmul.mubr.f32.gmra.mrb[0].mxu0 %v961
        %v1135 = vpop.f32.mrb[0].mxu0
        %v1136 = vadd.f32 0.0, %v1135
        %v1137 = vpop.f32.mrb[0].mxu0
        %v1138 = vadd.f32 0.0, %v1137
        %1139 = vmatprep.mubr.f32.mxu0 0.0
        %1140 = vmatmul.mubr.f32.gmra.mrb[0].mxu0 %v962
        %v1141 = vpop.f32.mrb[0].mxu0
        %v1142 = vadd.f32 0.0, %v1141
        %v1143 = vpop.f32.mrb[0].mxu0
        %v1144 = vadd.f32 0.0, %v1143
        %1145 = vmatprep.mubr.f32.mxu0 0.0
        %1146 = vmatmul.mubr.f32.gmra.mrb[0].mxu0 %v963
        %v1147 = vpop.f32.mrb[0].mxu0
        %v1148 = vadd.f32 0.0, %v1147
        %v1149 = vpop.f32.mrb[0].mxu0
        %v1150 = vadd.f32 0.0, %v1149
        %1151 = vmatprep.mubr.f32.mxu0 0.0
        %1152 = vmatmul.mubr.f32.gmra.mrb[0].mxu0 %v964
        %v1153 = vpop.f32.mrb[0].mxu0
        %v1154 = vadd.f32 0.0, %v1153
        %v1155 = vpop.f32.mrb[0].mxu0
        %v1156 = vadd.f32 0.0, %v1155
        %1157 = vdwg.mxu0
        %v1158 = vadd.f32 %v743, %v1064
        %v1159 = vadd.f32 %v745, %v1066
        %v1160 = vadd.f32 %v749, %v1070
        %v1161 = vadd.f32 %v751, %v1072
        %v1162 = vadd.f32 %v755, %v1076
        %v1163 = vadd.f32 %v757, %v1078
        %v1164 = vadd.f32 %v761, %v1082
        %v1165 = vadd.f32 %v763, %v1084
        %v1166 = vadd.f32 %v767, %v1088
        %v1167 = vadd.f32 %v769, %v1090
        %v1168 = vadd.f32 %v773, %v1094
        %v1169 = vadd.f32 %v775, %v1096
        %v1170 = vadd.f32 %v779, %v1100
        %v1171 = vadd.f32 %v781, %v1102
        %v1172 = vadd.f32 %v785, %v1106
        %v1173 = vadd.f32 %v787, %v1108
        %v1174 = vadd.f32 %v791, %v1112
        %v1175 = vadd.f32 %v793, %v1114
        %v1176 = vadd.f32 %v797, %v1118
        %v1177 = vadd.f32 %v799, %v1120
        %v1178 = vadd.f32 %v803, %v1124
        %v1179 = vadd.f32 %v805, %v1126
        %v1180 = vadd.f32 %v809, %v1130
        %v1181 = vadd.f32 %v811, %v1132
        %v1182 = vadd.f32 %v815, %v1136
        %v1183 = vadd.f32 %v817, %v1138
        %v1184 = vadd.f32 %v821, %v1142
        %v1185 = vadd.f32 %v823, %v1144
        %v1186 = vadd.f32 %v827, %v1148
        %v1187 = vadd.f32 %v829, %v1150
        %v1188 = vadd.f32 %v833, %v1154
        %v1189 = vadd.f32 %v835, %v1156
        %v1190 = vmax.f32 %v1159, 0.0
        %v1191 = vmax.f32 %v1161, 0.0
        %v1192 = vmax.f32 %v1163, 0.0
        %v1193 = vmax.f32 %v1165, 0.0
        %v1194 = vmax.f32 %v1167, 0.0
        %v1195 = vmax.f32 %v1169, 0.0
        %v1196 = vmax.f32 %v1171, 0.0
        %v1197 = vmax.f32 %v1173, 0.0
        %v1198 = vmax.f32 %v1175, 0.0
        %v1199 = vmax.f32 %v1177, 0.0
        %v1200 = vmax.f32 %v1179, 0.0
        %v1201 = vmax.f32 %v1181, 0.0
        %v1202 = vmax.f32 %v1183, 0.0
        %v1203 = vmax.f32 %v1185, 0.0
        %v1204 = vmax.f32 %v1187, 0.0
        %v1205 = vmax.f32 %v1189, 0.0
        %v1206 = vld [vmem:[#allocation5] sm:$0xff]
        %v1207 = vld [vmem:[#allocation5 + $0x8] sm:$0xff]
        %v1208 = vld [vmem:[#allocation5 + $0x10] sm:$0xff]
        %v1209 = vld [vmem:[#allocation5 + $0x18] sm:$0xff]
        %v1210 = vld [vmem:[#allocation5 + $0x20] sm:$0xff]
        %v1211 = vld [vmem:[#allocation5 + $0x28] sm:$0xff]
        %v1212 = vld [vmem:[#allocation5 + $0x30] sm:$0xff]
        %v1213 = vld [vmem:[#allocation5 + $0x38] sm:$0xff]
        %v1214 = vld [vmem:[#allocation5 + $0x40] sm:$0xff]
        %v1215 = vld [vmem:[#allocation5 + $0x48] sm:$0xff]
        %v1216 = vld [vmem:[#allocation5 + $0x50] sm:$0xff]
        %v1217 = vld [vmem:[#allocation5 + $0x58] sm:$0xff]
        %v1218 = vld [vmem:[#allocation5 + $0x60] sm:$0xff]
        %v1219 = vld [vmem:[#allocation5 + $0x68] sm:$0xff]
        %v1220 = vld [vmem:[#allocation5 + $0x70] sm:$0xff]
        %v1221 = vld [vmem:[#allocation5 + $0x78] sm:$0xff]
        %v1222 = vld [vmem:[%s5] sm:$0x1]
        %v1224 = vlaneseq
        %v1225 = vshrl.u32 %v1224, 7
        %v1226 = vsub.s32 0, %v1225
        %v1227 = vrot.slane %v1222, %v1226
        %1229 = vmatprep.subr.mxu0 0.0
        %1230 = vmatpush1.msra.mxu0 %v1206
        %1231 = vmatprep.subr.mxu0 0.0
        %1232 = vmatpush1.msra.mxu0 %v1207
        %1233 = vmatprep.subr.mxu0 0.0
        %1234 = vmatpush1.msra.mxu0 %v1208
        %1235 = vmatprep.subr.mxu0 0.0
        %1236 = vmatpush1.msra.mxu0 %v1209
        %1237 = vmatprep.subr.mxu0 0.0
        %1238 = vmatpush1.msra.mxu0 %v1210
        %1239 = vmatprep.subr.mxu0 0.0
        %1240 = vmatpush1.msra.mxu0 %v1211
        %1241 = vmatprep.subr.mxu0 0.0
        %1242 = vmatpush1.msra.mxu0 %v1212
        %1243 = vmatprep.subr.mxu0 0.0
        %1244 = vmatpush1.msra.mxu0 %v1213
        %1245 = vmatprep.subr.mxu0 0.0
        %1246 = vmatpush1.msra.mxu0 %v1214
        %1247 = vmatprep.subr.mxu0 0.0
        %1248 = vmatpush1.msra.mxu0 %v1215
        %1249 = vmatprep.subr.mxu0 0.0
        %1250 = vmatpush1.msra.mxu0 %v1216
        %1251 = vmatprep.subr.mxu0 0.0
        %1252 = vmatpush1.msra.mxu0 %v1217
        %1253 = vmatprep.subr.mxu0 0.0
        %1254 = vmatpush1.msra.mxu0 %v1218
        %1255 = vmatprep.subr.mxu0 0.0
        %1256 = vmatpush1.msra.mxu0 %v1219
        %1257 = vmatprep.subr.mxu0 0.0
        %1258 = vmatpush1.msra.mxu0 %v1220
        %1259 = vmatprep.subr.mxu0 0.0
        %1260 = vmatpush1.msra.mxu0 %v1221
        %1261 = vmatprep.subr.mxu0 0.0
        %1262 = vmatpush1.msra.mxu0 0.0
        %1263 = vmatprep.subr.mxu0 0.0
        %1264 = vmatpush1.msra.mxu0 0.0
        %1265 = vmatprep.subr.mxu0 0.0
        %1266 = vmatpush1.msra.mxu0 0.0
        %1267 = vmatprep.subr.mxu0 0.0
        %1268 = vmatpush1.msra.mxu0 0.0
        %1269 = vmatprep.subr.mxu0 0.0
        %1270 = vmatpush1.msra.mxu0 0.0
        %1271 = vmatprep.subr.mxu0 0.0
        %1272 = vmatpush1.msra.mxu0 0.0
        %1273 = vmatprep.subr.mxu0 0.0
        %1274 = vmatpush1.msra.mxu0 0.0
        %1275 = vmatprep.subr.mxu0 0.0
        %1276 = vmatpush1.msra.mxu0 0.0
        %1277 = vmatprep.subr.mxu0 0.0
        %1278 = vmatpush1.msra.mxu0 0.0
        %1279 = vmatprep.subr.mxu0 0.0
        %1280 = vmatpush1.msra.mxu0 0.0
        %1281 = vmatprep.subr.mxu0 0.0
        %1282 = vmatpush1.msra.mxu0 0.0
        %1283 = vmatprep.subr.mxu0 0.0
        %1284 = vmatpush1.msra.mxu0 0.0
        %1285 = vmatprep.subr.mxu0 0.0
        %1286 = vmatpush1.msra.mxu0 0.0
        %1287 = vmatprep.subr.mxu0 0.0
        %1288 = vmatpush1.msra.mxu0 0.0
        %1289 = vmatprep.subr.mxu0 0.0
        %1290 = vmatpush1.msra.mxu0 0.0
        %1291 = vmatprep.subr.mxu0 0.0
        %1292 = vmatpush1.msra.mxu0 0.0
        %1293 = vmatprep.mubr.f32.mxu0 0.0
        %1294 = vmatmul.mubr.f32.gmra.mrb[0].mxu0 %v1190
        %v1295 = vpop.f32.mrb[0].mxu0
        %v1296 = vadd.f32 %v1227, %v1295
        %v1297 = vpop.f32.mrb[0].mxu0
        %1298 = vmatprep.mubr.f32.mxu0 0.0
        %1299 = vmatmul.mubr.f32.gmra.mrb[0].mxu0 %v1191
        %v1300 = vpop.f32.mrb[0].mxu0
        %v1301 = vadd.f32 %v1227, %v1300
        %v1302 = vpop.f32.mrb[0].mxu0
        %1303 = vmatprep.mubr.f32.mxu0 0.0
        %1304 = vmatmul.mubr.f32.gmra.mrb[0].mxu0 %v1192
        %v1305 = vpop.f32.mrb[0].mxu0
        %v1306 = vadd.f32 %v1227, %v1305
        %v1307 = vpop.f32.mrb[0].mxu0
        %1308 = vmatprep.mubr.f32.mxu0 0.0
        %1309 = vmatmul.mubr.f32.gmra.mrb[0].mxu0 %v1193
        %v1310 = vpop.f32.mrb[0].mxu0
        %v1311 = vadd.f32 %v1227, %v1310
        %v1312 = vpop.f32.mrb[0].mxu0
        %1313 = vmatprep.mubr.f32.mxu0 0.0
        %1314 = vmatmul.mubr.f32.gmra.mrb[0].mxu0 %v1194
        %v1315 = vpop.f32.mrb[0].mxu0
        %v1316 = vadd.f32 %v1227, %v1315
        %v1317 = vpop.f32.mrb[0].mxu0
        %1318 = vmatprep.mubr.f32.mxu0 0.0
        %1319 = vmatmul.mubr.f32.gmra.mrb[0].mxu0 %v1195
        %v1320 = vpop.f32.mrb[0].mxu0
        %v1321 = vadd.f32 %v1227, %v1320
        %v1322 = vpop.f32.mrb[0].mxu0
        %1323 = vmatprep.mubr.f32.mxu0 0.0
        %1324 = vmatmul.mubr.f32.gmra.mrb[0].mxu0 %v1196
        %v1325 = vpop.f32.mrb[0].mxu0
        %v1326 = vadd.f32 %v1227, %v1325
        %v1327 = vpop.f32.mrb[0].mxu0
        %1328 = vmatprep.mubr.f32.mxu0 0.0
        %1329 = vmatmul.mubr.f32.gmra.mrb[0].mxu0 %v1197
        %v1330 = vpop.f32.mrb[0].mxu0
        %v1331 = vadd.f32 %v1227, %v1330
        %v1332 = vpop.f32.mrb[0].mxu0
        %1333 = vmatprep.mubr.f32.mxu0 0.0
        %1334 = vmatmul.mubr.f32.gmra.mrb[0].mxu0 %v1198
        %v1335 = vpop.f32.mrb[0].mxu0
        %v1336 = vadd.f32 %v1227, %v1335
        %v1337 = vpop.f32.mrb[0].mxu0
        %1338 = vmatprep.mubr.f32.mxu0 0.0
        %1339 = vmatmul.mubr.f32.gmra.mrb[0].mxu0 %v1199
        %v1340 = vpop.f32.mrb[0].mxu0
        %v1341 = vadd.f32 %v1227, %v1340
        %v1342 = vpop.f32.mrb[0].mxu0
        %1343 = vmatprep.mubr.f32.mxu0 0.0
        %1344 = vmatmul.mubr.f32.gmra.mrb[0].mxu0 %v1200
        %v1345 = vpop.f32.mrb[0].mxu0
        %v1346 = vadd.f32 %v1227, %v1345
        %v1347 = vpop.f32.mrb[0].mxu0
        %1348 = vmatprep.mubr.f32.mxu0 0.0
        %1349 = vmatmul.mubr.f32.gmra.mrb[0].mxu0 %v1201
        %v1350 = vpop.f32.mrb[0].mxu0
        %v1351 = vadd.f32 %v1227, %v1350
        %v1352 = vpop.f32.mrb[0].mxu0
        %1353 = vmatprep.mubr.f32.mxu0 0.0
        %1354 = vmatmul.mubr.f32.gmra.mrb[0].mxu0 %v1202
        %v1355 = vpop.f32.mrb[0].mxu0
        %v1356 = vadd.f32 %v1227, %v1355
        %v1357 = vpop.f32.mrb[0].mxu0
        %1358 = vmatprep.mubr.f32.mxu0 0.0
        %1359 = vmatmul.mubr.f32.gmra.mrb[0].mxu0 %v1203
        %v1360 = vpop.f32.mrb[0].mxu0
        %v1361 = vadd.f32 %v1227, %v1360
        %v1362 = vpop.f32.mrb[0].mxu0
        %1363 = vmatprep.mubr.f32.mxu0 0.0
        %1364 = vmatmul.mubr.f32.gmra.mrb[0].mxu0 %v1204
        %v1365 = vpop.f32.mrb[0].mxu0
        %v1366 = vadd.f32 %v1227, %v1365
        %v1367 = vpop.f32.mrb[0].mxu0
        %1368 = vmatprep.mubr.f32.mxu0 0.0
        %1369 = vmatmul.mubr.f32.gmra.mrb[0].mxu0 %v1205
        %v1370 = vpop.f32.mrb[0].mxu0
        %v1371 = vadd.f32 %v1227, %v1370
        %v1372 = vpop.f32.mrb[0].mxu0
        %1373 = vdwg.mxu0
        %v1374 = vxor.u32 %v1296, 2147483648
        %v1375 = vxor.u32 %v1301, 2147483648
        %v1376 = vxor.u32 %v1306, 2147483648
        %v1377 = vxor.u32 %v1311, 2147483648
        %v1378 = vxor.u32 %v1316, 2147483648
        %v1379 = vxor.u32 %v1321, 2147483648
        %v1380 = vxor.u32 %v1326, 2147483648
        %v1381 = vxor.u32 %v1331, 2147483648
        %v1382 = vxor.u32 %v1336, 2147483648
        %v1383 = vxor.u32 %v1341, 2147483648
        %v1384 = vxor.u32 %v1346, 2147483648
        %v1385 = vxor.u32 %v1351, 2147483648
        %v1386 = vxor.u32 %v1356, 2147483648
        %v1387 = vxor.u32 %v1361, 2147483648
        %v1388 = vxor.u32 %v1366, 2147483648
        %v1389 = vxor.u32 %v1371, 2147483648
        %v1390 = vmul.f32 %v1374, 1.442695
        %v1391 = vpow.pop %v1390
        %v1392 = vmul.f32 %v1375, 1.442695
        %v1393 = vpow.pop %v1392
        %v1394 = vmul.f32 %v1376, 1.442695
        %v1395 = vpow.pop %v1394
        %v1396 = vmul.f32 %v1377, 1.442695
        %v1397 = vpow.pop %v1396
        %v1398 = vmul.f32 %v1378, 1.442695
        %v1399 = vpow.pop %v1398
        %v1400 = vmul.f32 %v1379, 1.442695
        %v1401 = vpow.pop %v1400
        %v1402 = vmul.f32 %v1380, 1.442695
        %v1403 = vpow.pop %v1402
        %v1404 = vmul.f32 %v1381, 1.442695
        %v1405 = vpow.pop %v1404
        %v1406 = vmul.f32 %v1382, 1.442695
        %v1407 = vpow.pop %v1406
        %v1408 = vmul.f32 %v1383, 1.442695
        %v1409 = vpow.pop %v1408
        %v1410 = vmul.f32 %v1384, 1.442695
        %v1411 = vpow.pop %v1410
        %v1412 = vmul.f32 %v1385, 1.442695
        %v1413 = vpow.pop %v1412
        %v1414 = vmul.f32 %v1386, 1.442695
        %v1415 = vpow.pop %v1414
        %v1416 = vmul.f32 %v1387, 1.442695
        %v1417 = vpow.pop %v1416
        %v1418 = vmul.f32 %v1388, 1.442695
        %v1419 = vpow.pop %v1418
        %v1420 = vmul.f32 %v1389, 1.442695
        %v1421 = vpow.pop %v1420
        %v1422 = vadd.f32 %v1391, 1.0
        %v1423 = vadd.f32 %v1393, 1.0
        %v1424 = vadd.f32 %v1395, 1.0
        %v1425 = vadd.f32 %v1397, 1.0
        %v1426 = vadd.f32 %v1399, 1.0
        %v1427 = vadd.f32 %v1401, 1.0
        %v1428 = vadd.f32 %v1403, 1.0
        %v1429 = vadd.f32 %v1405, 1.0
        %v1430 = vadd.f32 %v1407, 1.0
        %v1431 = vadd.f32 %v1409, 1.0
        %v1432 = vadd.f32 %v1411, 1.0
        %v1433 = vadd.f32 %v1413, 1.0
        %v1434 = vadd.f32 %v1415, 1.0
        %v1435 = vadd.f32 %v1417, 1.0
        %v1436 = vadd.f32 %v1419, 1.0
        %v1437 = vadd.f32 %v1421, 1.0
        %v1438 = vrcp.pop %v1422
        %v1439 = vmul.f32 1.0, %v1438
        %v1440 = vrcp.pop %v1423
        %v1441 = vmul.f32 1.0, %v1440
        %v1442 = vrcp.pop %v1424
        %v1443 = vmul.f32 1.0, %v1442
        %v1444 = vrcp.pop %v1425
        %v1445 = vmul.f32 1.0, %v1444
        %v1446 = vrcp.pop %v1426
        %v1447 = vmul.f32 1.0, %v1446
        %v1448 = vrcp.pop %v1427
        %v1449 = vmul.f32 1.0, %v1448
        %v1450 = vrcp.pop %v1428
        %v1451 = vmul.f32 1.0, %v1450
        %v1452 = vrcp.pop %v1429
        %v1453 = vmul.f32 1.0, %v1452
        %v1454 = vrcp.pop %v1430
        %v1455 = vmul.f32 1.0, %v1454
        %v1456 = vrcp.pop %v1431
        %v1457 = vmul.f32 1.0, %v1456
        %v1458 = vrcp.pop %v1432
        %v1459 = vmul.f32 1.0, %v1458
        %v1460 = vrcp.pop %v1433
        %v1461 = vmul.f32 1.0, %v1460
        %v1462 = vrcp.pop %v1434
        %v1463 = vmul.f32 1.0, %v1462
        %v1464 = vrcp.pop %v1435
        %v1465 = vmul.f32 1.0, %v1464
        %v1466 = vrcp.pop %v1436
        %v1467 = vmul.f32 1.0, %v1466
        %v1468 = vrcp.pop %v1437
        %v1469 = vmul.f32 1.0, %v1468
        %v1470 = vmul.f32 %v1439, %v1158
        %v1471 = vmul.f32 %v1441, %v1160
        %v1472 = vmul.f32 %v1443, %v1162
        %v1473 = vmul.f32 %v1445, %v1164
        %v1474 = vmul.f32 %v1447, %v1166
        %v1475 = vmul.f32 %v1449, %v1168
        %v1476 = vmul.f32 %v1451, %v1170
        %v1477 = vmul.f32 %v1453, %v1172
        %v1478 = vmul.f32 %v1455, %v1174
        %v1479 = vmul.f32 %v1457, %v1176
        %v1480 = vmul.f32 %v1459, %v1178
        %v1481 = vmul.f32 %v1461, %v1180
        %v1482 = vmul.f32 %v1463, %v1182
        %v1483 = vmul.f32 %v1465, %v1184
        %v1484 = vmul.f32 %v1467, %v1186
        %v1485 = vmul.f32 %v1469, %v1188
        %v1486 = vmax.f32 %v1470, 0.0
        %v1487 = vmax.f32 %v1471, 0.0
        %v1488 = vmax.f32 %v1472, 0.0
        %v1489 = vmax.f32 %v1473, 0.0
        %v1490 = vmax.f32 %v1474, 0.0
        %v1491 = vmax.f32 %v1475, 0.0
        %v1492 = vmax.f32 %v1476, 0.0
        %v1493 = vmax.f32 %v1477, 0.0
        %v1494 = vmax.f32 %v1478, 0.0
        %v1495 = vmax.f32 %v1479, 0.0
        %v1496 = vmax.f32 %v1480, 0.0
        %v1497 = vmax.f32 %v1481, 0.0
        %v1498 = vmax.f32 %v1482, 0.0
        %v1499 = vmax.f32 %v1483, 0.0
        %v1500 = vmax.f32 %v1484, 0.0
        %v1501 = vmax.f32 %v1485, 0.0
        %v1502 = vld [vmem:[#allocation7] sm:$0xff]
        %v1503 = vld [vmem:[#allocation7 + $0x8] sm:$0xff]
        %v1504 = vld [vmem:[#allocation7 + $0x10] sm:$0xff]
        %v1505 = vld [vmem:[#allocation7 + $0x18] sm:$0xff]
        %v1506 = vld [vmem:[#allocation7 + $0x20] sm:$0xff]
        %v1507 = vld [vmem:[#allocation7 + $0x28] sm:$0xff]
        %v1508 = vld [vmem:[#allocation7 + $0x30] sm:$0xff]
        %v1509 = vld [vmem:[#allocation7 + $0x38] sm:$0xff]
        %v1510 = vld [vmem:[#allocation7 + $0x40] sm:$0xff]
        %v1511 = vld [vmem:[#allocation7 + $0x48] sm:$0xff]
        %v1512 = vld [vmem:[#allocation7 + $0x50] sm:$0xff]
        %v1513 = vld [vmem:[#allocation7 + $0x58] sm:$0xff]
        %v1514 = vld [vmem:[#allocation7 + $0x60] sm:$0xff]
        %v1515 = vld [vmem:[#allocation7 + $0x68] sm:$0xff]
        %v1516 = vld [vmem:[#allocation7 + $0x70] sm:$0xff]
        %v1517 = vld [vmem:[#allocation7 + $0x78] sm:$0xff]
        %v1518 = vld [vmem:[#allocation7 + $0x80] sm:$0xff]
        %v1519 = vld [vmem:[#allocation7 + $0x88] sm:$0xff]
        %v1520 = vld [vmem:[#allocation7 + $0x90] sm:$0xff]
        %v1521 = vld [vmem:[#allocation7 + $0x98] sm:$0xff]
        %v1522 = vld [vmem:[#allocation7 + $0xa0] sm:$0xff]
        %v1523 = vld [vmem:[#allocation7 + $0xa8] sm:$0xff]
        %v1524 = vld [vmem:[#allocation7 + $0xb0] sm:$0xff]
        %v1525 = vld [vmem:[#allocation7 + $0xb8] sm:$0xff]
        %v1526 = vld [vmem:[#allocation7 + $0xc0] sm:$0xff]
        %v1527 = vld [vmem:[#allocation7 + $0xc8] sm:$0xff]
        %v1528 = vld [vmem:[#allocation7 + $0xd0] sm:$0xff]
        %v1529 = vld [vmem:[#allocation7 + $0xd8] sm:$0xff]
        %v1530 = vld [vmem:[#allocation7 + $0xe0] sm:$0xff]
        %v1531 = vld [vmem:[#allocation7 + $0xe8] sm:$0xff]
        %v1532 = vld [vmem:[#allocation7 + $0xf0] sm:$0xff]
        %v1533 = vld [vmem:[#allocation7 + $0xf8] sm:$0xff]
        %v1534 = vld [vmem:[%s7] sm:$0x3]
        %v1536 = vlaneseq
        %v1537 = vshrl.u32 %v1536, 7
        %v1538 = vsub.s32 0, %v1537
        %v1539 = vrot.slane %v1534, %v1538
        %v1540 = vlaneseq
        %v1541 = vshrl.u32 %v1540, 7
        %v1542 = vsub.s32 1, %v1541
        %v1543 = vrot.slane %v1534, %v1542
        %1546 = vmatprep.subr.mxu0 %v1503
        %1547 = vmatpush1.msra.mxu0 %v1502
        %1548 = vmatprep.subr.mxu0 %v1505
        %1549 = vmatpush1.msra.mxu0 %v1504
        %1550 = vmatprep.subr.mxu0 %v1507
        %1551 = vmatpush1.msra.mxu0 %v1506
        %1552 = vmatprep.subr.mxu0 %v1509
        %1553 = vmatpush1.msra.mxu0 %v1508
        %1554 = vmatprep.subr.mxu0 %v1511
        %1555 = vmatpush1.msra.mxu0 %v1510
        %1556 = vmatprep.subr.mxu0 %v1513
        %1557 = vmatpush1.msra.mxu0 %v1512
        %1558 = vmatprep.subr.mxu0 %v1515
        %1559 = vmatpush1.msra.mxu0 %v1514
        %1560 = vmatprep.subr.mxu0 %v1517
        %1561 = vmatpush1.msra.mxu0 %v1516
        %1562 = vmatprep.subr.mxu0 %v1519
        %1563 = vmatpush1.msra.mxu0 %v1518
        %1564 = vmatprep.subr.mxu0 %v1521
        %1565 = vmatpush1.msra.mxu0 %v1520
        %1566 = vmatprep.subr.mxu0 %v1523
        %1567 = vmatpush1.msra.mxu0 %v1522
        %1568 = vmatprep.subr.mxu0 %v1525
        %1569 = vmatpush1.msra.mxu0 %v1524
        %1570 = vmatprep.subr.mxu0 %v1527
        %1571 = vmatpush1.msra.mxu0 %v1526
        %1572 = vmatprep.subr.mxu0 %v1529
        %1573 = vmatpush1.msra.mxu0 %v1528
        %1574 = vmatprep.subr.mxu0 %v1531
        %1575 = vmatpush1.msra.mxu0 %v1530
        %1576 = vmatprep.subr.mxu0 %v1533
        %1577 = vmatpush1.msra.mxu0 %v1532
        %1578 = vmatprep.subr.mxu0 0.0
        %1579 = vmatpush1.msra.mxu0 0.0
        %1580 = vmatprep.subr.mxu0 0.0
        %1581 = vmatpush1.msra.mxu0 0.0
        %1582 = vmatprep.subr.mxu0 0.0
        %1583 = vmatpush1.msra.mxu0 0.0
        %1584 = vmatprep.subr.mxu0 0.0
        %1585 = vmatpush1.msra.mxu0 0.0
        %1586 = vmatprep.subr.mxu0 0.0
        %1587 = vmatpush1.msra.mxu0 0.0
        %1588 = vmatprep.subr.mxu0 0.0
        %1589 = vmatpush1.msra.mxu0 0.0
        %1590 = vmatprep.subr.mxu0 0.0
        %1591 = vmatpush1.msra.mxu0 0.0
        %1592 = vmatprep.subr.mxu0 0.0
        %1593 = vmatpush1.msra.mxu0 0.0
        %1594 = vmatprep.subr.mxu0 0.0
        %1595 = vmatpush1.msra.mxu0 0.0
        %1596 = vmatprep.subr.mxu0 0.0
        %1597 = vmatpush1.msra.mxu0 0.0
        %1598 = vmatprep.subr.mxu0 0.0
        %1599 = vmatpush1.msra.mxu0 0.0
        %1600 = vmatprep.subr.mxu0 0.0
        %1601 = vmatpush1.msra.mxu0 0.0
        %1602 = vmatprep.subr.mxu0 0.0
        %1603 = vmatpush1.msra.mxu0 0.0
        %1604 = vmatprep.subr.mxu0 0.0
        %1605 = vmatpush1.msra.mxu0 0.0
        %1606 = vmatprep.subr.mxu0 0.0
        %1607 = vmatpush1.msra.mxu0 0.0
        %1608 = vmatprep.subr.mxu0 0.0
        %1609 = vmatpush1.msra.mxu0 0.0
        %1610 = vmatprep.mubr.f32.mxu0 0.0
        %1611 = vmatmul.mubr.f32.gmra.mrb[0].mxu0 %v1486
        %v1612 = vpop.f32.mrb[0].mxu0
        %v1613 = vadd.f32 %v1539, %v1612
        %v1614 = vpop.f32.mrb[0].mxu0
        %v1615 = vadd.f32 %v1543, %v1614
        %1616 = vmatprep.mubr.f32.mxu0 0.0
        %1617 = vmatmul.mubr.f32.gmra.mrb[0].mxu0 %v1487
        %v1618 = vpop.f32.mrb[0].mxu0
        %v1619 = vadd.f32 %v1539, %v1618
        %v1620 = vpop.f32.mrb[0].mxu0
        %v1621 = vadd.f32 %v1543, %v1620
        %1622 = vmatprep.mubr.f32.mxu0 0.0
        %1623 = vmatmul.mubr.f32.gmra.mrb[0].mxu0 %v1488
        %v1624 = vpop.f32.mrb[0].mxu0
        %v1625 = vadd.f32 %v1539, %v1624
        %v1626 = vpop.f32.mrb[0].mxu0
        %v1627 = vadd.f32 %v1543, %v1626
        %1628 = vmatprep.mubr.f32.mxu0 0.0
        %1629 = vmatmul.mubr.f32.gmra.mrb[0].mxu0 %v1489
        %v1630 = vpop.f32.mrb[0].mxu0
        %v1631 = vadd.f32 %v1539, %v1630
        %v1632 = vpop.f32.mrb[0].mxu0
        %v1633 = vadd.f32 %v1543, %v1632
        %1634 = vmatprep.mubr.f32.mxu0 0.0
        %1635 = vmatmul.mubr.f32.gmra.mrb[0].mxu0 %v1490
        %v1636 = vpop.f32.mrb[0].mxu0
        %v1637 = vadd.f32 %v1539, %v1636
        %v1638 = vpop.f32.mrb[0].mxu0
        %v1639 = vadd.f32 %v1543, %v1638
        %1640 = vmatprep.mubr.f32.mxu0 0.0
        %1641 = vmatmul.mubr.f32.gmra.mrb[0].mxu0 %v1491
        %v1642 = vpop.f32.mrb[0].mxu0
        %v1643 = vadd.f32 %v1539, %v1642
        %v1644 = vpop.f32.mrb[0].mxu0
        %v1645 = vadd.f32 %v1543, %v1644
        %1646 = vmatprep.mubr.f32.mxu0 0.0
        %1647 = vmatmul.mubr.f32.gmra.mrb[0].mxu0 %v1492
        %v1648 = vpop.f32.mrb[0].mxu0
        %v1649 = vadd.f32 %v1539, %v1648
        %v1650 = vpop.f32.mrb[0].mxu0
        %v1651 = vadd.f32 %v1543, %v1650
        %1652 = vmatprep.mubr.f32.mxu0 0.0
        %1653 = vmatmul.mubr.f32.gmra.mrb[0].mxu0 %v1493
        %v1654 = vpop.f32.mrb[0].mxu0
        %v1655 = vadd.f32 %v1539, %v1654
        %v1656 = vpop.f32.mrb[0].mxu0
        %v1657 = vadd.f32 %v1543, %v1656
        %1658 = vmatprep.mubr.f32.mxu0 0.0
        %1659 = vmatmul.mubr.f32.gmra.mrb[0].mxu0 %v1494
        %v1660 = vpop.f32.mrb[0].mxu0
        %v1661 = vadd.f32 %v1539, %v1660
        %v1662 = vpop.f32.mrb[0].mxu0
        %v1663 = vadd.f32 %v1543, %v1662
        %1664 = vmatprep.mubr.f32.mxu0 0.0
        %1665 = vmatmul.mubr.f32.gmra.mrb[0].mxu0 %v1495
        %v1666 = vpop.f32.mrb[0].mxu0
        %v1667 = vadd.f32 %v1539, %v1666
        %v1668 = vpop.f32.mrb[0].mxu0
        %v1669 = vadd.f32 %v1543, %v1668
        %1670 = vmatprep.mubr.f32.mxu0 0.0
        %1671 = vmatmul.mubr.f32.gmra.mrb[0].mxu0 %v1496
        %v1672 = vpop.f32.mrb[0].mxu0
        %v1673 = vadd.f32 %v1539, %v1672
        %v1674 = vpop.f32.mrb[0].mxu0
        %v1675 = vadd.f32 %v1543, %v1674
        %1676 = vmatprep.mubr.f32.mxu0 0.0
        %1677 = vmatmul.mubr.f32.gmra.mrb[0].mxu0 %v1497
        %v1678 = vpop.f32.mrb[0].mxu0
        %v1679 = vadd.f32 %v1539, %v1678
        %v1680 = vpop.f32.mrb[0].mxu0
        %v1681 = vadd.f32 %v1543, %v1680
        %1682 = vmatprep.mubr.f32.mxu0 0.0
        %1683 = vmatmul.mubr.f32.gmra.mrb[0].mxu0 %v1498
        %v1684 = vpop.f32.mrb[0].mxu0
        %v1685 = vadd.f32 %v1539, %v1684
        %v1686 = vpop.f32.mrb[0].mxu0
        %v1687 = vadd.f32 %v1543, %v1686
        %1688 = vmatprep.mubr.f32.mxu0 0.0
        %1689 = vmatmul.mubr.f32.gmra.mrb[0].mxu0 %v1499
        %v1690 = vpop.f32.mrb[0].mxu0
        %v1691 = vadd.f32 %v1539, %v1690
        %v1692 = vpop.f32.mrb[0].mxu0
        %v1693 = vadd.f32 %v1543, %v1692
        %1694 = vmatprep.mubr.f32.mxu0 0.0
        %1695 = vmatmul.mubr.f32.gmra.mrb[0].mxu0 %v1500
        %v1696 = vpop.f32.mrb[0].mxu0
        %v1697 = vadd.f32 %v1539, %v1696
        %v1698 = vpop.f32.mrb[0].mxu0
        %v1699 = vadd.f32 %v1543, %v1698
        %1700 = vmatprep.mubr.f32.mxu0 0.0
        %1701 = vmatmul.mubr.f32.gmra.mrb[0].mxu0 %v1501
        %v1702 = vpop.f32.mrb[0].mxu0
        %v1703 = vadd.f32 %v1539, %v1702
        %v1704 = vpop.f32.mrb[0].mxu0
        %v1705 = vadd.f32 %v1543, %v1704
        %1706 = vdwg.mxu0
        %v1707 = vmax.f32 %v1615, 0.0
        %v1708 = vmax.f32 %v1621, 0.0
        %v1709 = vmax.f32 %v1627, 0.0
        %v1710 = vmax.f32 %v1633, 0.0
        %v1711 = vmax.f32 %v1639, 0.0
        %v1712 = vmax.f32 %v1645, 0.0
        %v1713 = vmax.f32 %v1651, 0.0
        %v1714 = vmax.f32 %v1657, 0.0
        %v1715 = vmax.f32 %v1663, 0.0
        %v1716 = vmax.f32 %v1669, 0.0
        %v1717 = vmax.f32 %v1675, 0.0
        %v1718 = vmax.f32 %v1681, 0.0
        %v1719 = vmax.f32 %v1687, 0.0
        %v1720 = vmax.f32 %v1693, 0.0
        %v1721 = vmax.f32 %v1699, 0.0
        %v1722 = vmax.f32 %v1705, 0.0
        %v1723 = vld [vmem:[#allocation8] sm:$0xff]
        %v1724 = vld [vmem:[#allocation8 + $0x8] sm:$0xff]
        %v1725 = vld [vmem:[#allocation8 + $0x10] sm:$0xff]
        %v1726 = vld [vmem:[#allocation8 + $0x18] sm:$0xff]
        %v1727 = vld [vmem:[#allocation8 + $0x20] sm:$0xff]
        %v1728 = vld [vmem:[#allocation8 + $0x28] sm:$0xff]
        %v1729 = vld [vmem:[#allocation8 + $0x30] sm:$0xff]
        %v1730 = vld [vmem:[#allocation8 + $0x38] sm:$0xff]
        %v1731 = vld [vmem:[#allocation8 + $0x40] sm:$0xff]
        %v1732 = vld [vmem:[#allocation8 + $0x48] sm:$0xff]
        %v1733 = vld [vmem:[#allocation8 + $0x50] sm:$0xff]
        %v1734 = vld [vmem:[#allocation8 + $0x58] sm:$0xff]
        %v1735 = vld [vmem:[#allocation8 + $0x60] sm:$0xff]
        %v1736 = vld [vmem:[#allocation8 + $0x68] sm:$0xff]
        %v1737 = vld [vmem:[#allocation8 + $0x70] sm:$0xff]
        %v1738 = vld [vmem:[#allocation8 + $0x78] sm:$0xff]
        %v1739 = vld [vmem:[%s9] sm:$0x1]
        %v1741 = vlaneseq
        %v1742 = vshrl.u32 %v1741, 7
        %v1743 = vsub.s32 0, %v1742
        %v1744 = vrot.slane %v1739, %v1743
        %1746 = vmatprep.subr.mxu0 0.0
        %1747 = vmatpush1.msra.mxu0 %v1723
        %1748 = vmatprep.subr.mxu0 0.0
        %1749 = vmatpush1.msra.mxu0 %v1724
        %1750 = vmatprep.subr.mxu0 0.0
        %1751 = vmatpush1.msra.mxu0 %v1725
        %1752 = vmatprep.subr.mxu0 0.0
        %1753 = vmatpush1.msra.mxu0 %v1726
        %1754 = vmatprep.subr.mxu0 0.0
        %1755 = vmatpush1.msra.mxu0 %v1727
        %1756 = vmatprep.subr.mxu0 0.0
        %1757 = vmatpush1.msra.mxu0 %v1728
        %1758 = vmatprep.subr.mxu0 0.0
        %1759 = vmatpush1.msra.mxu0 %v1729
        %1760 = vmatprep.subr.mxu0 0.0
        %1761 = vmatpush1.msra.mxu0 %v1730
        %1762 = vmatprep.subr.mxu0 0.0
        %1763 = vmatpush1.msra.mxu0 %v1731
        %1764 = vmatprep.subr.mxu0 0.0
        %1765 = vmatpush1.msra.mxu0 %v1732
        %1766 = vmatprep.subr.mxu0 0.0
        %1767 = vmatpush1.msra.mxu0 %v1733
        %1768 = vmatprep.subr.mxu0 0.0
        %1769 = vmatpush1.msra.mxu0 %v1734
        %1770 = vmatprep.subr.mxu0 0.0
        %1771 = vmatpush1.msra.mxu0 %v1735
        %1772 = vmatprep.subr.mxu0 0.0
        %1773 = vmatpush1.msra.mxu0 %v1736
        %1774 = vmatprep.subr.mxu0 0.0
        %1775 = vmatpush1.msra.mxu0 %v1737
        %1776 = vmatprep.subr.mxu0 0.0
        %1777 = vmatpush1.msra.mxu0 %v1738
        %1778 = vmatprep.subr.mxu0 0.0
        %1779 = vmatpush1.msra.mxu0 0.0
        %1780 = vmatprep.subr.mxu0 0.0
        %1781 = vmatpush1.msra.mxu0 0.0
        %1782 = vmatprep.subr.mxu0 0.0
        %1783 = vmatpush1.msra.mxu0 0.0
        %1784 = vmatprep.subr.mxu0 0.0
        %1785 = vmatpush1.msra.mxu0 0.0
        %1786 = vmatprep.subr.mxu0 0.0
        %1787 = vmatpush1.msra.mxu0 0.0
        %1788 = vmatprep.subr.mxu0 0.0
        %1789 = vmatpush1.msra.mxu0 0.0
        %1790 = vmatprep.subr.mxu0 0.0
        %1791 = vmatpush1.msra.mxu0 0.0
        %1792 = vmatprep.subr.mxu0 0.0
        %1793 = vmatpush1.msra.mxu0 0.0
        %1794 = vmatprep.subr.mxu0 0.0
        %1795 = vmatpush1.msra.mxu0 0.0
        %1796 = vmatprep.subr.mxu0 0.0
        %1797 = vmatpush1.msra.mxu0 0.0
        %1798 = vmatprep.subr.mxu0 0.0
        %1799 = vmatpush1.msra.mxu0 0.0
        %1800 = vmatprep.subr.mxu0 0.0
        %1801 = vmatpush1.msra.mxu0 0.0
        %1802 = vmatprep.subr.mxu0 0.0
        %1803 = vmatpush1.msra.mxu0 0.0
        %1804 = vmatprep.subr.mxu0 0.0
        %1805 = vmatpush1.msra.mxu0 0.0
        %1806 = vmatprep.subr.mxu0 0.0
        %1807 = vmatpush1.msra.mxu0 0.0
        %1808 = vmatprep.subr.mxu0 0.0
        %1809 = vmatpush1.msra.mxu0 0.0
        %1810 = vmatprep.mubr.f32.mxu0 0.0
        %1811 = vmatmul.mubr.f32.gmra.mrb[0].mxu0 %v1707
        %v1812 = vpop.f32.mrb[0].mxu0
        %v1813 = vadd.f32 %v1744, %v1812
        %v1814 = vpop.f32.mrb[0].mxu0
        %1815 = vmatprep.mubr.f32.mxu0 0.0
        %1816 = vmatmul.mubr.f32.gmra.mrb[0].mxu0 %v1708
        %v1817 = vpop.f32.mrb[0].mxu0
        %v1818 = vadd.f32 %v1744, %v1817
        %v1819 = vpop.f32.mrb[0].mxu0
        %1820 = vmatprep.mubr.f32.mxu0 0.0
        %1821 = vmatmul.mubr.f32.gmra.mrb[0].mxu0 %v1709
        %v1822 = vpop.f32.mrb[0].mxu0
        %v1823 = vadd.f32 %v1744, %v1822
        %v1824 = vpop.f32.mrb[0].mxu0
        %1825 = vmatprep.mubr.f32.mxu0 0.0
        %1826 = vmatmul.mubr.f32.gmra.mrb[0].mxu0 %v1710
        %v1827 = vpop.f32.mrb[0].mxu0
        %v1828 = vadd.f32 %v1744, %v1827
        %v1829 = vpop.f32.mrb[0].mxu0
        %1830 = vmatprep.mubr.f32.mxu0 0.0
        %1831 = vmatmul.mubr.f32.gmra.mrb[0].mxu0 %v1711
        %v1832 = vpop.f32.mrb[0].mxu0
        %v1833 = vadd.f32 %v1744, %v1832
        %v1834 = vpop.f32.mrb[0].mxu0
        %1835 = vmatprep.mubr.f32.mxu0 0.0
        %1836 = vmatmul.mubr.f32.gmra.mrb[0].mxu0 %v1712
        %v1837 = vpop.f32.mrb[0].mxu0
        %v1838 = vadd.f32 %v1744, %v1837
        %v1839 = vpop.f32.mrb[0].mxu0
        %1840 = vmatprep.mubr.f32.mxu0 0.0
        %1841 = vmatmul.mubr.f32.gmra.mrb[0].mxu0 %v1713
        %v1842 = vpop.f32.mrb[0].mxu0
        %v1843 = vadd.f32 %v1744, %v1842
        %v1844 = vpop.f32.mrb[0].mxu0
        %1845 = vmatprep.mubr.f32.mxu0 0.0
        %1846 = vmatmul.mubr.f32.gmra.mrb[0].mxu0 %v1714
        %v1847 = vpop.f32.mrb[0].mxu0
        %v1848 = vadd.f32 %v1744, %v1847
        %v1849 = vpop.f32.mrb[0].mxu0
        %1850 = vmatprep.mubr.f32.mxu0 0.0
        %1851 = vmatmul.mubr.f32.gmra.mrb[0].mxu0 %v1715
        %v1852 = vpop.f32.mrb[0].mxu0
        %v1853 = vadd.f32 %v1744, %v1852
        %v1854 = vpop.f32.mrb[0].mxu0
        %1855 = vmatprep.mubr.f32.mxu0 0.0
        %1856 = vmatmul.mubr.f32.gmra.mrb[0].mxu0 %v1716
        %v1857 = vpop.f32.mrb[0].mxu0
        %v1858 = vadd.f32 %v1744, %v1857
        %v1859 = vpop.f32.mrb[0].mxu0
        %1860 = vmatprep.mubr.f32.mxu0 0.0
        %1861 = vmatmul.mubr.f32.gmra.mrb[0].mxu0 %v1717
        %v1862 = vpop.f32.mrb[0].mxu0
        %v1863 = vadd.f32 %v1744, %v1862
        %v1864 = vpop.f32.mrb[0].mxu0
        %1865 = vmatprep.mubr.f32.mxu0 0.0
        %1866 = vmatmul.mubr.f32.gmra.mrb[0].mxu0 %v1718
        %v1867 = vpop.f32.mrb[0].mxu0
        %v1868 = vadd.f32 %v1744, %v1867
        %v1869 = vpop.f32.mrb[0].mxu0
        %1870 = vmatprep.mubr.f32.mxu0 0.0
        %1871 = vmatmul.mubr.f32.gmra.mrb[0].mxu0 %v1719
        %v1872 = vpop.f32.mrb[0].mxu0
        %v1873 = vadd.f32 %v1744, %v1872
        %v1874 = vpop.f32.mrb[0].mxu0
        %1875 = vmatprep.mubr.f32.mxu0 0.0
        %1876 = vmatmul.mubr.f32.gmra.mrb[0].mxu0 %v1720
        %v1877 = vpop.f32.mrb[0].mxu0
        %v1878 = vadd.f32 %v1744, %v1877
        %v1879 = vpop.f32.mrb[0].mxu0
        %1880 = vmatprep.mubr.f32.mxu0 0.0
        %1881 = vmatmul.mubr.f32.gmra.mrb[0].mxu0 %v1721
        %v1882 = vpop.f32.mrb[0].mxu0
        %v1883 = vadd.f32 %v1744, %v1882
        %v1884 = vpop.f32.mrb[0].mxu0
        %1885 = vmatprep.mubr.f32.mxu0 0.0
        %1886 = vmatmul.mubr.f32.gmra.mrb[0].mxu0 %v1722
        %v1887 = vpop.f32.mrb[0].mxu0
        %v1888 = vadd.f32 %v1744, %v1887
        %v1889 = vpop.f32.mrb[0].mxu0
        %1890 = vdwg.mxu0
        %v1891 = vxor.u32 %v1813, 2147483648
        %v1892 = vxor.u32 %v1818, 2147483648
        %v1893 = vxor.u32 %v1823, 2147483648
        %v1894 = vxor.u32 %v1828, 2147483648
        %v1895 = vxor.u32 %v1833, 2147483648
        %v1896 = vxor.u32 %v1838, 2147483648
        %v1897 = vxor.u32 %v1843, 2147483648
        %v1898 = vxor.u32 %v1848, 2147483648
        %v1899 = vxor.u32 %v1853, 2147483648
        %v1900 = vxor.u32 %v1858, 2147483648
        %v1901 = vxor.u32 %v1863, 2147483648
        %v1902 = vxor.u32 %v1868, 2147483648
        %v1903 = vxor.u32 %v1873, 2147483648
        %v1904 = vxor.u32 %v1878, 2147483648
        %v1905 = vxor.u32 %v1883, 2147483648
        %v1906 = vxor.u32 %v1888, 2147483648
        %v1907 = vmul.f32 %v1891, 1.442695
        %v1908 = vpow.pop %v1907
        %v1909 = vmul.f32 %v1892, 1.442695
        %v1910 = vpow.pop %v1909
        %v1911 = vmul.f32 %v1893, 1.442695
        %v1912 = vpow.pop %v1911
        %v1913 = vmul.f32 %v1894, 1.442695
        %v1914 = vpow.pop %v1913
        %v1915 = vmul.f32 %v1895, 1.442695
        %v1916 = vpow.pop %v1915
        %v1917 = vmul.f32 %v1896, 1.442695
        %v1918 = vpow.pop %v1917
        %v1919 = vmul.f32 %v1897, 1.442695
        %v1920 = vpow.pop %v1919
        %v1921 = vmul.f32 %v1898, 1.442695
        %v1922 = vpow.pop %v1921
        %v1923 = vmul.f32 %v1899, 1.442695
        %v1924 = vpow.pop %v1923
        %v1925 = vmul.f32 %v1900, 1.442695
        %v1926 = vpow.pop %v1925
        %v1927 = vmul.f32 %v1901, 1.442695
        %v1928 = vpow.pop %v1927
        %v1929 = vmul.f32 %v1902, 1.442695
        %v1930 = vpow.pop %v1929
        %v1931 = vmul.f32 %v1903, 1.442695
        %v1932 = vpow.pop %v1931
        %v1933 = vmul.f32 %v1904, 1.442695
        %v1934 = vpow.pop %v1933
        %v1935 = vmul.f32 %v1905, 1.442695
        %v1936 = vpow.pop %v1935
        %v1937 = vmul.f32 %v1906, 1.442695
        %v1938 = vpow.pop %v1937
        %v1939 = vadd.f32 %v1908, 1.0
        %v1940 = vadd.f32 %v1910, 1.0
        %v1941 = vadd.f32 %v1912, 1.0
        %v1942 = vadd.f32 %v1914, 1.0
        %v1943 = vadd.f32 %v1916, 1.0
        %v1944 = vadd.f32 %v1918, 1.0
        %v1945 = vadd.f32 %v1920, 1.0
        %v1946 = vadd.f32 %v1922, 1.0
        %v1947 = vadd.f32 %v1924, 1.0
        %v1948 = vadd.f32 %v1926, 1.0
        %v1949 = vadd.f32 %v1928, 1.0
        %v1950 = vadd.f32 %v1930, 1.0
        %v1951 = vadd.f32 %v1932, 1.0
        %v1952 = vadd.f32 %v1934, 1.0
        %v1953 = vadd.f32 %v1936, 1.0
        %v1954 = vadd.f32 %v1938, 1.0
        %v1955 = vrcp.pop %v1939
        %v1956 = vmul.f32 1.0, %v1955
        %v1957 = vrcp.pop %v1940
        %v1958 = vmul.f32 1.0, %v1957
        %v1959 = vrcp.pop %v1941
        %v1960 = vmul.f32 1.0, %v1959
        %v1961 = vrcp.pop %v1942
        %v1962 = vmul.f32 1.0, %v1961
        %v1963 = vrcp.pop %v1943
        %v1964 = vmul.f32 1.0, %v1963
        %v1965 = vrcp.pop %v1944
        %v1966 = vmul.f32 1.0, %v1965
        %v1967 = vrcp.pop %v1945
        %v1968 = vmul.f32 1.0, %v1967
        %v1969 = vrcp.pop %v1946
        %v1970 = vmul.f32 1.0, %v1969
        %v1971 = vrcp.pop %v1947
        %v1972 = vmul.f32 1.0, %v1971
        %v1973 = vrcp.pop %v1948
        %v1974 = vmul.f32 1.0, %v1973
        %v1975 = vrcp.pop %v1949
        %v1976 = vmul.f32 1.0, %v1975
        %v1977 = vrcp.pop %v1950
        %v1978 = vmul.f32 1.0, %v1977
        %v1979 = vrcp.pop %v1951
        %v1980 = vmul.f32 1.0, %v1979
        %v1981 = vrcp.pop %v1952
        %v1982 = vmul.f32 1.0, %v1981
        %v1983 = vrcp.pop %v1953
        %v1984 = vmul.f32 1.0, %v1983
        %v1985 = vrcp.pop %v1954
        %v1986 = vmul.f32 1.0, %v1985
        %v1987 = vmul.f32 %v1956, %v1613
        %v1988 = vmul.f32 %v1958, %v1619
        %v1989 = vmul.f32 %v1960, %v1625
        %v1990 = vmul.f32 %v1962, %v1631
        %v1991 = vmul.f32 %v1964, %v1637
        %v1992 = vmul.f32 %v1966, %v1643
        %v1993 = vmul.f32 %v1968, %v1649
        %v1994 = vmul.f32 %v1970, %v1655
        %v1995 = vmul.f32 %v1972, %v1661
        %v1996 = vmul.f32 %v1974, %v1667
        %v1997 = vmul.f32 %v1976, %v1673
        %v1998 = vmul.f32 %v1978, %v1679
        %v1999 = vmul.f32 %v1980, %v1685
        %v2000 = vmul.f32 %v1982, %v1691
        %v2001 = vmul.f32 %v1984, %v1697
        %v2002 = vmul.f32 %v1986, %v1703
        %2003 = vst [vmem:[%s412] sm:$0xff] %v1987
        %2004 = vst [vmem:[%s412 + $0x8] sm:$0xff] %v1988
        %2005 = vst [vmem:[%s412 + $0x10] sm:$0xff] %v1989
        %2006 = vst [vmem:[%s412 + $0x18] sm:$0xff] %v1990
        %2007 = vst [vmem:[%s412 + $0x20] sm:$0xff] %v1991
        %2008 = vst [vmem:[%s412 + $0x28] sm:$0xff] %v1992
        %2009 = vst [vmem:[%s412 + $0x30] sm:$0xff] %v1993
        %2010 = vst [vmem:[%s412 + $0x38] sm:$0xff] %v1994
        %2011 = vst [vmem:[%s412 + $0x40] sm:$0xff] %v1995
        %2012 = vst [vmem:[%s412 + $0x48] sm:$0xff] %v1996
        %2013 = vst [vmem:[%s412 + $0x50] sm:$0xff] %v1997
        %2014 = vst [vmem:[%s412 + $0x58] sm:$0xff] %v1998
        %2015 = vst [vmem:[%s412 + $0x60] sm:$0xff] %v1999
        %2016 = vst [vmem:[%s412 + $0x68] sm:$0xff] %v2000
        %2017 = vst [vmem:[%s412 + $0x70] sm:$0xff] %v2001
        %2018 = vst [vmem:[%s412 + $0x78] sm:$0xff] %v2002
        %s2019 = sand.u32 %s250, 1
        %s2020 = scalar_lea.sflag [#allocation4], %s2019
        %s2021 = sand.u32 %s250, 1
        %s2022 = smul.addr %s2021, 128
        %s2023 = scalar_lea.vmem [#allocation10], %s2022
        // Predicated region
        $region77: #{tpu_custom_call.1} parent=59 // pred_check
          %p2024 = pneg %p260
        $region78: #{tpu_custom_call.1} parent=59 // pred_check_branch
          %2026 = sbr.rel (%p2024) target = $region80
        $region79: #{tpu_custom_call.1} parent=59 // pred_region
          %s2027 = smul.u32 16, %s27
          %s2029 = ssub.s32 2048, 2048
          %2030 = vsyncadd %s2020, %s2029
          %s2031 = smul.addr %s2027, 128
          %s2032 = scalar_lea.hbm %s10, %s2031
          %s2033 = sshll.u32 %s2023, 4
          %s2034 = int_to_ptr.vmem [resolvable:$true] %s2033
          %2039 = dma.vmem_to_hbm [thread:$0]  %s2034, 2048, %s2032, %s2020, 128, 128, 8
        $region80: #{tpu_custom_call.1} parent=59 // pred_fallthru
          _
      $region60: #{tpu_custom_call.1} parent=5 // pred_fallthru
        _
      %p2040 = scmp.le.s32.totalorder 2, %s22
      // Predicated region
      $region81: #{tpu_custom_call.1} parent=5 // pred_check
        %p2041 = pneg %p2040
      $region82: #{tpu_custom_call.1} parent=5 // pred_check_branch
        %2043 = sbr.rel (%p2041) target = $region84
      $region83: #{tpu_custom_call.1} parent=5 // pred_region
        %s2044 = ssub.s32 %s22, 2
        // Predicated region
        $region85: #{tpu_custom_call.1} parent=83 // pred_check
          %p2045 = pneg %p266
        $region86: #{tpu_custom_call.1} parent=83 // pred_check_branch
          %2047 = sbr.rel (%p2045) target = $region88
        $region87: #{tpu_custom_call.1} parent=83 // pred_region
          %s2048 = sand.u32 %s251, 1
          %s2049 = scalar_lea.sflag [#allocation4], %s2048
          %s2050 = sand.u32 %s251, 1
          %s2051 = smul.addr %s2050, 128
          %s2052 = scalar_lea.vmem [#allocation10], %s2051
          %2053 = dma.done %s2049, 2048
        $region88: #{tpu_custom_call.1} parent=83 // pred_fallthru
          _
      $region84: #{tpu_custom_call.1} parent=5 // pred_fallthru
        _
    $region6: #{tpu_custom_call.1} parent=1 // loop_footer
      %s26 = sadd.s32 1, %s22
    $region7: #{tpu_custom_call.1} parent=1 // loop_footer_branch
      %21 = sbr.rel target = $region3
    $region8: #{tpu_custom_call.1} parent=1 // loop_exit
      _
    %2054 = vsyncpa [#allocation3], 1
    %s2055 = scalar_lea.sflag [#allocation3], 1
    %2056 = vsyncpa %s2055, 1
    %2057 = vsyncpa [#allocation6], 1
    %2058 = vsyncpa [#allocation9], 1
    %2059 = vsyncpa [#allocation4], 1
    %s2060 = scalar_lea.sflag [#allocation4], 1
    %2061 = vsyncpa %s2060, 1

</llo_original>
